<compile_context>
chip_gen: v7x
topology: tpu7x:2x2x1
jax: 0.10.0
libtpu: 0.0.40
codegen_flags: <defaults>
</compile_context>

<pallas_src>
import jax
import jax.numpy as jnp
import numpy as np
from jax import lax
from jax.experimental import pallas as pl
from jax.experimental.pallas import tpu as pltpu

C_IN, C1, C2, K = 3, 64, 128, 3


def conv_block_kernel(xcol_ref, w1_ref, b1_ref, w2_ref, b2_ref, out_ref,
                      a2_ref):
    # xcol_ref: (SH+2, W, 27)    bf16  conv1 im2col patches for this strip;
    #                                  local row p <-> conv1 output row
    #                                  row0 - 1 + p (p=0 / p=SH+1 are halo).
    # w1_ref:   (27, 64)         bf16
    # b1_ref:   (1, 64)          f32
    # w2_ref:   (3, 192, 128)    bf16  per-kh blocks; kw band order (1, 0, 2)
    # b2_ref:   (1, 128)         f32
    # out_ref:  (SH, W, 128)     f32   one H-strip of the output (NHWC)
    # a2_ref:   ((SH+2)*W, 192)  bf16  scratch: conv2 kw-band im2col buffer
    SH, W, _ = out_ref.shape
    rows1 = (SH + 2) * W
    s = pl.program_id(1)
    n_strips = pl.num_programs(1)

    # ---- conv1: one ((SH+2)*W, 27) @ (27, 64) MXU matmul (halo rows incl.) --
    patch1 = xcol_ref[...].reshape(rows1, K * K * C_IN)
    acc1 = jnp.dot(patch1, w1_ref[...], preferred_element_type=jnp.float32)
    y1 = jnp.maximum(acc1 + b1_ref[...], 0.0).astype(jnp.bfloat16)  # (rows1,64)

    # ---- build the 3 kw-shift bands of the conv2 im2col buffer --------------
    # a2 column layout: [0:64]   = kw=1 (no shift, y1 itself)
    #                   [64:128] = kw=0 (shift right one col, zero at col 0)
    #                   [128:192]= kw=2 (shift left one col, zero at col W-1)
    # w2_ref rows are permuted in the wrapper to match this order.
    y1_3d = y1.reshape(SH + 2, W, C1)
    zcol = jnp.zeros((SH + 2, 1, C1), jnp.bfloat16)
    band_kw0 = jnp.concatenate([zcol, y1_3d[:, :W - 1, :]], axis=1)
    band_kw2 = jnp.concatenate([y1_3d[:, 1:, :], zcol], axis=1)
    # (kw=1, kw=0) written as one 128-lane-aligned, full-width store.
    a2_ref[:, 0:2 * C1] = jnp.concatenate(
        [y1, band_kw0.reshape(rows1, C1)], axis=-1)
    a2_ref[:, 2 * C1:3 * C1] = band_kw2.reshape(rows1, C1)

    # Halo rows outside the image: conv2 must see zeros there (its own SAME
    # padding), not conv1 evaluated past the border.
    @pl.when(s == 0)
    def _():
        a2_ref[0:W, :] = jnp.zeros((W, K * C1), jnp.bfloat16)

    @pl.when(s == n_strips - 1)
    def _():
        a2_ref[(SH + 1) * W:(SH + 2) * W, :] = jnp.zeros((W, K * C1),
                                                         jnp.bfloat16)

    # ---- conv2: 3 accumulating (SH*W, 192) @ (192, 128) MXU matmuls ---------
    acc2 = jnp.zeros((SH * W, C2), jnp.float32)
    for kh in range(K):
        acc2 = acc2 + jnp.dot(a2_ref[kh * W:kh * W + SH * W, :], w2_ref[kh],
                              preferred_element_type=jnp.float32)
    y2 = jnp.maximum(acc2 + b2_ref[...], 0.0)
    out_ref[...] = y2.reshape(SH, W, C2).astype(out_ref.dtype)


def _pick_strip_h(H, W, target_px=2048):
    """Largest multiple-of-8 divisor of H with <= target_px output px/strip."""
    if H * W <= target_px:
        return H
    best = None
    sh = 8
    while sh <= H:
        if H % sh == 0 and sh * W <= target_px:
            best = sh
        sh += 8
    if best is None:
        best = 8 if H % 8 == 0 else H
    return best


def cnn_enhancement_block(x_nchw, w1, b1, w2, b2, *, strip_h=None,
                          out_layout="NCHW"):
    """Fused Conv(3->64,3x3,SAME)+ReLU -> Conv(64->128,3x3,SAME)+ReLU.

    x_nchw: (B, 3, H, W) f32; w1: (3,3,3,64) HWIO; w2: (3,3,64,128) HWIO.
    Returns (B, 128, H, W) f32 (PyTorch NCHW) or (B, H, W, 128) for
    out_layout="NHWC" (skips the extra output-transpose HBM round trip).
    """
    B, cin, H, W = x_nchw.shape
    assert cin == C_IN
    SH = strip_h if strip_h is not None else _pick_strip_h(H, W)
    if H % SH != 0:
        SH = H
    n_strips = H // SH

    # NCHW -> NHWC, zero-pad 2 rows / 1 col per side, bf16 matmul operands.
    x_nhwc = jnp.transpose(x_nchw, (0, 2, 3, 1))
    x_pad = jnp.pad(x_nhwc, ((0, 0), (2, 2), (1, 1), (0, 0))).astype(
        jnp.bfloat16)

    # conv1 im2col patches; row r <-> conv1 output row r-1 (rows 0/H+1 = halo):
    # xcol[b, r, c, (kh*3+kw)*3+ci] = x_pad[b, r+kh, c+kw, ci]
    xcol = jnp.concatenate(
        [x_pad[:, kh:kh + H + 2, kw:kw + W, :]
         for kh in range(K) for kw in range(K)], axis=-1)     # (B, H+2, W, 27)
    # Pre-blocked overlapping strips (2 shared halo rows per strip) so the
    # kernel only keeps one strip's patches in VMEM at a time.
    xcol_strips = jnp.stack(
        [xcol[:, s * SH:s * SH + SH + 2] for s in range(n_strips)],
        axis=1)                                     # (B, n_strips, SH+2, W, 27)

    # Matmul-ready weights / biases.  w2 kw-blocks are permuted to (1, 0, 2)
    # to match the kernel's band layout (unshifted band first -> aligned store).
    w1_flat = w1.reshape(K * K * C_IN, C1).astype(jnp.bfloat16)      # (27, 64)
    w2_perm = w2[:, jnp.array([1, 0, 2]), :, :].reshape(K, K * C1, C2)
    w2_perm = w2_perm.astype(jnp.bfloat16)                           # (3,192,128)
    b1_r = b1.reshape(1, C1).astype(jnp.float32)
    b2_r = b2.reshape(1, C2).astype(jnp.float32)

    out_nhwc = pl.pallas_call(
        conv_block_kernel,
        out_shape=jax.ShapeDtypeStruct((B, H, W, C2), jnp.float32),
        grid_spec=pltpu.PrefetchScalarGridSpec(
            num_scalar_prefetch=0,
            grid=(B, n_strips),
            in_specs=[
                pl.BlockSpec((None, None, SH + 2, W, K * K * C_IN),
                             lambda b, s: (b, s, 0, 0, 0)),
                pl.BlockSpec((K * K * C_IN, C1), lambda b, s: (0, 0)),
                pl.BlockSpec((1, C1), lambda b, s: (0, 0)),
                pl.BlockSpec((K, K * C1, C2), lambda b, s: (0, 0, 0)),
                pl.BlockSpec((1, C2), lambda b, s: (0, 0)),
            ],
            out_specs=pl.BlockSpec((None, SH, W, C2),
                                   lambda b, s: (b, s, 0, 0)),
            scratch_shapes=[
                pltpu.VMEM(((SH + 2) * W, K * C1), jnp.bfloat16),
            ],
        ),
        compiler_params=pltpu.CompilerParams(
            dimension_semantics=("parallel", "parallel"),
            vmem_limit_bytes=48 * 1024 * 1024,
        ),
    )(xcol_strips, w1_flat, b1_r, w2_perm, b2_r)

    if out_layout == "NHWC":
        return out_nhwc
    # TODO(synk): prefer out_layout="NHWC" downstream; this transpose is a full
    # HBM round trip that only exists to match the PyTorch NCHW convention.
    return jnp.transpose(out_nhwc, (0, 3, 1, 2))


def reference(x_nchw, w1, b1, w2, b2, *, quantize=False):
    """XLA reference. quantize=True mimics the kernel's bf16 operand rounding."""
    cast = ((lambda a: a.astype(jnp.bfloat16).astype(jnp.float32))
            if quantize else (lambda a: a))
    x = jnp.transpose(x_nchw, (0, 2, 3, 1))
    dn = ("NHWC", "HWIO", "NHWC")
    y = lax.conv_general_dilated(cast(x), cast(w1), (1, 1), "SAME",
                                 dimension_numbers=dn,
                                 precision=lax.Precision.HIGHEST)
    y = jnp.maximum(y + b1.reshape(1, 1, 1, C1), 0.0)
    y = cast(y)  # kernel stages layer-1 activations in bf16
    y = lax.conv_general_dilated(y, cast(w2), (1, 1), "SAME",
                                 dimension_numbers=dn,
                                 precision=lax.Precision.HIGHEST)
    y = jnp.maximum(y + b2.reshape(1, 1, 1, C2), 0.0)
    return jnp.transpose(y, (0, 3, 1, 2))


if __name__ == "__main__":
    key = jax.random.PRNGKey(0)
    k_x, k_w1, k_b1, k_w2, k_b2, k_x2 = jax.random.split(key, 6)

    B, H, W = 2, 16, 16
    x = jax.random.normal(k_x, (B, C_IN, H, W), dtype=jnp.float32)

    # Deterministic parameters (HWIO layout for conv weights).
    w1 = jax.random.normal(k_w1, (K, K, C_IN, C1), dtype=jnp.float32) * 0.1
    b1 = jax.random.normal(k_b1, (1, C1), dtype=jnp.float32) * 0.05
    w2 = jax.random.normal(k_w2, (K, K, C1, C2), dtype=jnp.float32) * 0.05
    b2 = jax.random.normal(k_b2, (1, C2), dtype=jnp.float32) * 0.05

    out = jax.block_until_ready(cnn_enhancement_block(x, w1, b1, w2, b2))
    assert out.shape == (B, C2, H, W), out.shape

    # bf16-quantized reference (same quantization points as the kernel).
    ref_q = jax.block_until_ready(reference(x, w1, b1, w2, b2, quantize=True))
    np.testing.assert_allclose(np.asarray(out), np.asarray(ref_q),
                               rtol=1e-2, atol=1e-2)
    # Full-f32 reference; loose tolerance accounts for bf16 matmul operands.
    ref_f = jax.block_until_ready(reference(x, w1, b1, w2, b2, quantize=False))
    np.testing.assert_allclose(np.asarray(out), np.asarray(ref_f),
                               rtol=5e-2, atol=5e-2)

    # Multi-strip case (strip_h=8 -> 4 strips): exercises recomputed conv1
    # halo rows, strip-boundary zero padding and a non-square W.
    x2 = jax.random.normal(k_x2, (1, C_IN, 32, 24), dtype=jnp.float32)
    out2 = jax.block_until_ready(
        cnn_enhancement_block(x2, w1, b1, w2, b2, strip_h=8))
    ref2 = jax.block_until_ready(reference(x2, w1, b1, w2, b2, quantize=True))
    np.testing.assert_allclose(np.asarray(out2), np.asarray(ref2),
                               rtol=1e-2, atol=1e-2)

    print("KERNEL_OK")
</pallas_src>

<mosaic_0001>
module attributes {stable_mosaic.version = 11 : i64} {
  func.func @conv_block_kernel(%arg0: i32, %arg1: i32, %arg2: memref<1x1x18x16x27xbf16, #tpu.memory_space<vmem>>, %arg3: memref<27x64xbf16, #tpu.memory_space<vmem>>, %arg4: memref<1x64xf32, #tpu.memory_space<vmem>>, %arg5: memref<3x192x128xbf16, #tpu.memory_space<vmem>>, %arg6: memref<1x128xf32, #tpu.memory_space<vmem>>, %arg7: memref<1x16x16x128xf32, #tpu.memory_space<vmem>>, %arg8: memref<288x192xbf16, #tpu.memory_space<vmem>>) attributes {dimension_semantics = [#tpu.dimension_semantics<parallel>, #tpu.dimension_semantics<parallel>], iteration_bounds = array<i64: 2, 1>, scalar_prefetch = 0 : i64, scratch_operands = 1 : i64, tpu.core_type = #tpu.core_type<tc>, window_params = [{transform_indices = @transform_0, window_bounds = array<i64: 1, 1, 18, 16, 27>}, {pipeline_mode = #tpu.pipeline_mode<synchronous>, transform_indices = @transform_1, window_bounds = array<i64: 27, 64>}, {pipeline_mode = #tpu.pipeline_mode<synchronous>, transform_indices = @transform_2, window_bounds = array<i64: 1, 64>}, {pipeline_mode = #tpu.pipeline_mode<synchronous>, transform_indices = @transform_3, window_bounds = array<i64: 3, 192, 128>}, {pipeline_mode = #tpu.pipeline_mode<synchronous>, transform_indices = @transform_4, window_bounds = array<i64: 1, 128>}, {transform_indices = @transform_5, window_bounds = array<i64: 1, 16, 16, 128>}]} {
    %c0 = arith.constant 0 : index
    %c0_0 = arith.constant 0 : index
    %c0_1 = arith.constant 0 : index
    %c0_2 = arith.constant 0 : index
    %c0_3 = arith.constant 0 : index
    %0 = vector.load %arg2[%c0, %c0_0, %c0_1, %c0_2, %c0_3] : memref<1x1x18x16x27xbf16, #tpu.memory_space<vmem>>, vector<1x1x18x16x27xbf16>
    %1 = vector.shape_cast %0 : vector<1x1x18x16x27xbf16> to vector<18x16x27xbf16>
    %2 = vector.shape_cast %1 : vector<18x16x27xbf16> to vector<288x27xbf16>
    %c0_4 = arith.constant 0 : index
    %c0_5 = arith.constant 0 : index
    %3 = vector.load %arg3[%c0_4, %c0_5] : memref<27x64xbf16, #tpu.memory_space<vmem>>, vector<27x64xbf16>
    %cst = arith.constant dense<0.000000e+00> : vector<288x64xf32>
    %4 = tpu.matmul %2, %3, %cst {dimension_numbers = #tpu.dot_dimension_numbers<[1], [0], [0], [1], [0, 0, 1, 1], [], []>} : vector<288x27xbf16>, vector<27x64xbf16>, vector<288x64xf32> -> vector<288x64xf32>
    %c0_6 = arith.constant 0 : index
    %c0_7 = arith.constant 0 : index
    %5 = vector.load %arg4[%c0_6, %c0_7] : memref<1x64xf32, #tpu.memory_space<vmem>>, vector<1x64xf32>
    %6 = vector.broadcast %5 : vector<1x64xf32> to vector<288x64xf32>
    %7 = arith.addf %4, %6 : vector<288x64xf32>
    %cst_8 = arith.constant 0.000000e+00 : f32
    %8 = vector.broadcast %cst_8 : f32 to vector<288x64xf32>
    %9 = arith.maximumf %7, %8 : vector<288x64xf32>
    %10 = arith.truncf %9 : vector<288x64xf32> to vector<288x64xbf16>
    %11 = vector.shape_cast %10 : vector<288x64xbf16> to vector<18x16x64xbf16>
    %cst_9 = arith.constant 0.000000e+00 : bf16
    %12 = vector.broadcast %cst_9 : bf16 to vector<18x1x64xbf16>
    %13 = vector.extract_strided_slice %11 {offsets = [0, 0, 0], sizes = [18, 15, 64], strides = [1, 1, 1]} : vector<18x16x64xbf16> to vector<18x15x64xbf16>
    %14 = tpu.concatenate %12, %13 in 1 : vector<18x1x64xbf16>, vector<18x15x64xbf16> -> vector<18x16x64xbf16>
    %15 = vector.extract_strided_slice %11 {offsets = [0, 1, 0], sizes = [18, 15, 64], strides = [1, 1, 1]} : vector<18x16x64xbf16> to vector<18x15x64xbf16>
    %16 = tpu.concatenate %15, %12 in 1 : vector<18x15x64xbf16>, vector<18x1x64xbf16> -> vector<18x16x64xbf16>
    %17 = vector.shape_cast %14 : vector<18x16x64xbf16> to vector<288x64xbf16>
    %18 = tpu.concatenate %10, %17 in 1 : vector<288x64xbf16>, vector<288x64xbf16> -> vector<288x128xbf16>
    %c0_10 = arith.constant 0 : index
    %c0_11 = arith.constant 0 : index
    %19 = vector.load %arg8[%c0_10, %c0_11] : memref<288x192xbf16, #tpu.memory_space<vmem>>, vector<288x128xbf16>
    tpu.vector_store %arg8[%c0_10, %c0_11], %18 {strides = array<i32>} : memref<288x192xbf16, #tpu.memory_space<vmem>>, vector<288x128xbf16>,
    %20 = vector.shape_cast %16 : vector<18x16x64xbf16> to vector<288x64xbf16>
    %c0_12 = arith.constant 0 : index
    %c128 = arith.constant 128 : index
    %21 = vector.load %arg8[%c0_12, %c128] : memref<288x192xbf16, #tpu.memory_space<vmem>>, vector<288x64xbf16>
    tpu.vector_store %arg8[%c0_12, %c128], %20 {strides = array<i32>} : memref<288x192xbf16, #tpu.memory_space<vmem>>, vector<288x64xbf16>,
    %c0_i32 = arith.constant 0 : i32
    %22 = arith.cmpi eq, %arg1, %c0_i32 : i32
    %23 = arith.extui %22 : i1 to i32
    %c0_i32_13 = arith.constant 0 : i32
    %24 = arith.cmpi ne, %23, %c0_i32_13 : i32
    scf.if %24 {
      %cst_38 = arith.constant 0.000000e+00 : bf16
      %53 = vector.broadcast %cst_38 : bf16 to vector<16x192xbf16>
      %c0_39 = arith.constant 0 : index
      %c0_40 = arith.constant 0 : index
      %54 = vector.load %arg8[%c0_39, %c0_40] : memref<288x192xbf16, #tpu.memory_space<vmem>>, vector<16x192xbf16>
      tpu.vector_store %arg8[%c0_39, %c0_40], %53 {strides = array<i32>} : memref<288x192xbf16, #tpu.memory_space<vmem>>, vector<16x192xbf16>,
    } else {
    }
    %c0_i32_14 = arith.constant 0 : i32
    %25 = arith.cmpi eq, %arg1, %c0_i32_14 : i32
    %26 = arith.extui %25 : i1 to i32
    %c0_i32_15 = arith.constant 0 : i32
    %27 = arith.cmpi ne, %26, %c0_i32_15 : i32
    scf.if %27 {
      %cst_38 = arith.constant 0.000000e+00 : bf16
      %53 = vector.broadcast %cst_38 : bf16 to vector<16x192xbf16>
      %c272 = arith.constant 272 : index
      %c0_39 = arith.constant 0 : index
      %54 = vector.load %arg8[%c272, %c0_39] : memref<288x192xbf16, #tpu.memory_space<vmem>>, vector<16x192xbf16>
      tpu.vector_store %arg8[%c272, %c0_39], %53 {strides = array<i32>} : memref<288x192xbf16, #tpu.memory_space<vmem>>, vector<16x192xbf16>,
    } else {
    }
    %cst_16 = arith.constant 0.000000e+00 : f32
    %28 = vector.broadcast %cst_16 : f32 to vector<256x128xf32>
    %c0_17 = arith.constant 0 : index
    %c0_18 = arith.constant 0 : index
    %29 = vector.load %arg8[%c0_17, %c0_18] : memref<288x192xbf16, #tpu.memory_space<vmem>>, vector<256x192xbf16>
    %c0_19 = arith.constant 0 : index
    %c0_20 = arith.constant 0 : index
    %c0_21 = arith.constant 0 : index
    %30 = vector.load %arg5[%c0_19, %c0_20, %c0_21] : memref<3x192x128xbf16, #tpu.memory_space<vmem>>, vector<1x192x128xbf16>
    %31 = vector.shape_cast %30 : vector<1x192x128xbf16> to vector<192x128xbf16>
    %cst_22 = arith.constant dense<0.000000e+00> : vector<256x128xf32>
    %32 = tpu.matmul %29, %31, %cst_22 {dimension_numbers = #tpu.dot_dimension_numbers<[1], [0], [0], [1], [0, 0, 1, 1], [], []>} : vector<256x192xbf16>, vector<192x128xbf16>, vector<256x128xf32> -> vector<256x128xf32>
    %33 = arith.addf %28, %32 : vector<256x128xf32>
    %c16 = arith.constant 16 : index
    %c0_23 = arith.constant 0 : index
    %34 = vector.load %arg8[%c16, %c0_23] : memref<288x192xbf16, #tpu.memory_space<vmem>>, vector<256x192xbf16>
    %c1 = arith.constant 1 : index
    %c0_24 = arith.constant 0 : index
    %c0_25 = arith.constant 0 : index
    %35 = vector.load %arg5[%c1, %c0_24, %c0_25] : memref<3x192x128xbf16, #tpu.memory_space<vmem>>, vector<1x192x128xbf16>
    %36 = vector.shape_cast %35 : vector<1x192x128xbf16> to vector<192x128xbf16>
    %cst_26 = arith.constant dense<0.000000e+00> : vector<256x128xf32>
    %37 = tpu.matmul %34, %36, %cst_26 {dimension_numbers = #tpu.dot_dimension_numbers<[1], [0], [0], [1], [0, 0, 1, 1], [], []>} : vector<256x192xbf16>, vector<192x128xbf16>, vector<256x128xf32> -> vector<256x128xf32>
    %38 = arith.addf %33, %37 : vector<256x128xf32>
    %c32 = arith.constant 32 : index
    %c0_27 = arith.constant 0 : index
    %39 = vector.load %arg8[%c32, %c0_27] : memref<288x192xbf16, #tpu.memory_space<vmem>>, vector<256x192xbf16>
    %c2 = arith.constant 2 : index
    %c0_28 = arith.constant 0 : index
    %c0_29 = arith.constant 0 : index
    %40 = vector.load %arg5[%c2, %c0_28, %c0_29] : memref<3x192x128xbf16, #tpu.memory_space<vmem>>, vector<1x192x128xbf16>
    %41 = vector.shape_cast %40 : vector<1x192x128xbf16> to vector<192x128xbf16>
    %cst_30 = arith.constant dense<0.000000e+00> : vector<256x128xf32>
    %42 = tpu.matmul %39, %41, %cst_30 {dimension_numbers = #tpu.dot_dimension_numbers<[1], [0], [0], [1], [0, 0, 1, 1], [], []>} : vector<256x192xbf16>, vector<192x128xbf16>, vector<256x128xf32> -> vector<256x128xf32>
    %43 = arith.addf %38, %42 : vector<256x128xf32>
    %c0_31 = arith.constant 0 : index
    %c0_32 = arith.constant 0 : index
    %44 = vector.load %arg6[%c0_31, %c0_32] : memref<1x128xf32, #tpu.memory_space<vmem>>, vector<1x128xf32>
    %45 = vector.broadcast %44 : vector<1x128xf32> to vector<256x128xf32>
    %46 = arith.addf %43, %45 : vector<256x128xf32>
    %cst_33 = arith.constant 0.000000e+00 : f32
    %47 = vector.broadcast %cst_33 : f32 to vector<256x128xf32>
    %48 = arith.maximumf %46, %47 : vector<256x128xf32>
    %49 = vector.shape_cast %48 : vector<256x128xf32> to vector<16x16x128xf32>
    %c0_34 = arith.constant 0 : index
    %c0_35 = arith.constant 0 : index
    %c0_36 = arith.constant 0 : index
    %c0_37 = arith.constant 0 : index
    %50 = vector.load %arg7[%c0_34, %c0_35, %c0_36, %c0_37] : memref<1x16x16x128xf32, #tpu.memory_space<vmem>>, vector<1x16x16x128xf32>
    %51 = vector.shape_cast %50 : vector<1x16x16x128xf32> to vector<16x16x128xf32>
    %52 = vector.shape_cast %49 : vector<16x16x128xf32> to vector<1x16x16x128xf32>
    tpu.vector_store %arg7[%c0_34, %c0_35, %c0_36, %c0_37], %52 {strides = array<i32>} : memref<1x16x16x128xf32, #tpu.memory_space<vmem>>, vector<1x16x16x128xf32>,
    return
  }
  func.func @transform_0(%arg0: i32, %arg1: i32) -> (i32, i32, i32, i32, i32) {
    %c0_i32 = arith.constant 0 : i32
    %c0_i32_0 = arith.constant 0 : i32
    %c0_i32_1 = arith.constant 0 : i32
    %c0_i32_2 = arith.constant 0 : i32
    return %arg0, %arg1, %c0_i32, %c0_i32_0, %c0_i32_1 : i32, i32, i32, i32, i32
  }
  func.func @transform_1(%arg0: i32, %arg1: i32) -> (i32, i32) {
    %c0_i32 = arith.constant 0 : i32
    %c0_i32_0 = arith.constant 0 : i32
    %c0_i32_1 = arith.constant 0 : i32
    return %c0_i32, %c0_i32_0 : i32, i32
  }
  func.func @transform_2(%arg0: i32, %arg1: i32) -> (i32, i32) {
    %c0_i32 = arith.constant 0 : i32
    %c0_i32_0 = arith.constant 0 : i32
    %c0_i32_1 = arith.constant 0 : i32
    return %c0_i32, %c0_i32_0 : i32, i32
  }
  func.func @transform_3(%arg0: i32, %arg1: i32) -> (i32, i32, i32) {
    %c0_i32 = arith.constant 0 : i32
    %c0_i32_0 = arith.constant 0 : i32
    %c0_i32_1 = arith.constant 0 : i32
    %c0_i32_2 = arith.constant 0 : i32
    return %c0_i32, %c0_i32_0, %c0_i32_1 : i32, i32, i32
  }
  func.func @transform_4(%arg0: i32, %arg1: i32) -> (i32, i32) {
    %c0_i32 = arith.constant 0 : i32
    %c0_i32_0 = arith.constant 0 : i32
    %c0_i32_1 = arith.constant 0 : i32
    return %c0_i32, %c0_i32_0 : i32, i32
  }
  func.func @transform_5(%arg0: i32, %arg1: i32) -> (i32, i32, i32, i32) {
    %c0_i32 = arith.constant 0 : i32
    %c0_i32_0 = arith.constant 0 : i32
    %c0_i32_1 = arith.constant 0 : i32
    return %arg0, %arg1, %c0_i32, %c0_i32_0 : i32, i32, i32, i32
  }
}

</mosaic_0001>

<llo_original>
// kernel: tpu_custom_call.1
$region0: #{tpu_custom_call.1}
  #allocation0 [shape = 'u32[]', space=smem, size = 0x4, offset = 0x4, fixed_abs, tag = 'smem constant byte address 0x4 - core index']
  #allocation1 [shape = 'u32[144,128]{1,0:T(1,128)}', space=vmem, size = 0x12000, scoped, tag = 'internal scratch']
  #allocation2 [shape = 'bf16[288,192]{1,0:T(16,128)(2,1)}', space=vmem, size = 0x24000, scoped, tag = 'scratch operand']
  %s0 = inlined_call_operand.hbm [shape: bf16[2,1,18,16,27], index: 0, kind: input, shape index: {}]
  %s1 = inlined_call_operand.hbm [shape: bf16[27,64], index: 1, kind: input, shape index: {}]
  %s2 = inlined_call_operand.vmem [shape: f32[1,64], index: 2, kind: input, shape index: {}]
  %s3 = inlined_call_operand.hbm [shape: bf16[3,192,128], index: 3, kind: input, shape index: {}]
  %s4 = inlined_call_operand.vmem [shape: f32[1,128], index: 4, kind: input, shape index: {}]
  %s5 = inlined_call_operand.hbm [shape: f32[2,16,16,128], index: 5, kind: output, shape index: {}]
  %s6 = sld [smem:[#allocation0]]
  $region69: #{tpu_custom_call.1} parent=0
    _
  %s8 = ssub.s32 1, %s6
  %s9 = scalar_select 0, %s8, %s6
  $region1: #{tpu_custom_call.1} parent=0
    #allocation3 [shape = 'u8[147456]{0}', space=vmem, size = 0x24000, scoped, tag = 'input window, operand 0']
    #allocation4 [shape = 's32[2]{0}', space=sflag, size = 0x8, scoped, tag = 'scoped memory for tpu_custom_call.1']
    #allocation5 [shape = 's32[2]{0}', space=sflag, size = 0x8, scoped, tag = 'scoped memory for tpu_custom_call.1']
    #allocation6 [shape = 'u8[8192]{0}', space=vmem, size = 0x2000, scoped, tag = 'input window, operand 1, single buffered']
    #allocation7 [shape = 's32[1]{0}', space=sflag, size = 0x4, scoped, tag = 'scoped memory for tpu_custom_call.1']
    #allocation8 [shape = 'u8[147456]{0}', space=vmem, size = 0x24000, scoped, tag = 'input window, operand 3, single buffered']
    #allocation9 [shape = 'u8[262144]{0}', space=vmem, size = 0x40000, scoped, tag = 'output window, operand 0']
    %10 = vsyncpa [#allocation4], 0
    %s11 = scalar_lea.sflag [#allocation4], 1
    %12 = vsyncpa %s11, 0
    %13 = vsyncpa [#allocation7], 0
    %14 = vsyncpa [#allocation5], 0
    %s15 = scalar_lea.sflag [#allocation5], 1
    %16 = vsyncpa %s15, 0
    loop: start=0, step=1, limit=4
    $region2: #{tpu_custom_call.1} parent=1 // loop_pre_header
      _
    $region3: #{tpu_custom_call.1} parent=1 // loop_header
      %s18 = sphi 0, %s22
      %p19 = scmp.ge.s32.totalorder %s18, 4
      %s25 = sphi 0, %s37
      %s26 = sphi 0, %s33
      %s27 = sphi 0, %s25
      %s28 = sphi 0, %s26
      %s29 = sphi 0, %s27
      %s30 = sphi 0, %s28
      %s42 = sphi 0, %s44
      %s45 = sphi 0, %s42
      %s46 = sphi 0, %s45
      %s62 = sphi 0, %s46
      %s66 = sphi 0, %s66
      %s68 = sphi 0, %s66
      %s69 = sphi 0, %s68
      %s83 = sphi 0, %s69
      %s87 = sphi 0, %s87
      %s89 = sphi 0, %s87
      %s90 = sphi 0, %s89
      %s104 = sphi 0, %s90
      %s108 = sphi 0, %s108
      %s110 = sphi 0, %s108
      %s111 = sphi 0, %s110
      %s125 = sphi 0, %s111
      %s129 = sphi 0, %s129
      %s131 = sphi 0, %s129
      %s132 = sphi 0, %s131
      %s146 = sphi 0, %s132
      %s154 = sphi 0, %s156
      %s157 = sphi 0, %s154
      %s158 = sphi 0, %s157
      %s174 = sphi 0, %s158
    $region4: #{tpu_custom_call.1} parent=1 // loop_header_branch
      %21 = sbr.rel (%p19) target = $region8
    $region5: #{tpu_custom_call.1} parent=1 // loop_body
      %s23 = ssub.s32 %s18, 1
      %s24 = ssub.s32 %s18, 2
      %s31 = sadd.s32 1, %s26
      %p32 = scmp.ge.s32.totalorder %s31, 1
      %s33 = scalar_select %p32, 0, %s31
      %s34 = sadd.s32 1, %s25
      %s35 = scalar_select %p32, %s34, %s25
      %p36 = scmp.ge.s32.totalorder %s35, 2
      %s37 = scalar_select %p36, 0, %s35
      %s38 = ssub.s32 %s25, %s37
      %s39 = ssub.s32 %s26, %s33
      %s40 = sor.u32 %s38, %s39
      %p41 = scmp.eq.s32.totalorder %s40, 0
      %s43 = sadd.s32 %s42, 1
      %s44 = scalar_select %p41, %s42, %s43
      %p47 = pneg %p41
      %p48 = scmp.eq.s32.totalorder %s18, 1
      %p49 = por %p47, %p48
      %p50 = scmp.ne.s32.totalorder %s42, %s45
      %p51 = scmp.eq.s32.totalorder %s18, 0
      %p52 = por %p50, %p51
      %p53 = scmp.ne.s32.totalorder %s42, %s45
      %p54 = scmp.eq.s32.totalorder %s23, 1
      %p55 = por %p53, %p54
      %p56 = scmp.ne.s32.totalorder %s45, %s46
      %p57 = scmp.eq.s32.totalorder %s23, 0
      %p58 = por %p56, %p57
      %p59 = scmp.ne.s32.totalorder %s45, %s46
      %p60 = scmp.eq.s32.totalorder %s24, 1
      %p61 = por %p59, %p60
      %p63 = scmp.ne.s32.totalorder %s46, %s62
      %p64 = scmp.eq.s32.totalorder %s24, 0
      %p65 = por %p63, %p64
      %s67 = sadd.s32 %s66, 1
      %p70 = scmp.eq.s32.totalorder %s18, 1
      %p71 = scmp.ne.s32.totalorder %s66, %s68
      %p72 = scmp.eq.s32.totalorder %s18, 0
      %p73 = por %p71, %p72
      %p74 = scmp.ne.s32.totalorder %s66, %s68
      %p75 = scmp.eq.s32.totalorder %s23, 1
      %p76 = por %p74, %p75
      %p77 = scmp.ne.s32.totalorder %s68, %s69
      %p78 = scmp.eq.s32.totalorder %s23, 0
      %p79 = por %p77, %p78
      %p80 = scmp.ne.s32.totalorder %s68, %s69
      %p81 = scmp.eq.s32.totalorder %s24, 1
      %p82 = por %p80, %p81
      %p84 = scmp.ne.s32.totalorder %s69, %s83
      %p85 = scmp.eq.s32.totalorder %s24, 0
      %p86 = por %p84, %p85
      %s88 = sadd.s32 %s87, 1
      %p91 = scmp.eq.s32.totalorder %s18, 1
      %p92 = scmp.ne.s32.totalorder %s87, %s89
      %p93 = scmp.eq.s32.totalorder %s18, 0
      %p94 = por %p92, %p93
      %p95 = scmp.ne.s32.totalorder %s87, %s89
      %p96 = scmp.eq.s32.totalorder %s23, 1
      %p97 = por %p95, %p96
      %p98 = scmp.ne.s32.totalorder %s89, %s90
      %p99 = scmp.eq.s32.totalorder %s23, 0
      %p100 = por %p98, %p99
      %p101 = scmp.ne.s32.totalorder %s89, %s90
      %p102 = scmp.eq.s32.totalorder %s24, 1
      %p103 = por %p101, %p102
      %p105 = scmp.ne.s32.totalorder %s90, %s104
      %p106 = scmp.eq.s32.totalorder %s24, 0
      %p107 = por %p105, %p106
      %s109 = sadd.s32 %s108, 1
      %p112 = scmp.eq.s32.totalorder %s18, 1
      %p113 = scmp.ne.s32.totalorder %s108, %s110
      %p114 = scmp.eq.s32.totalorder %s18, 0
      %p115 = por %p113, %p114
      %p116 = scmp.ne.s32.totalorder %s108, %s110
      %p117 = scmp.eq.s32.totalorder %s23, 1
      %p118 = por %p116, %p117
      %p119 = scmp.ne.s32.totalorder %s110, %s111
      %p120 = scmp.eq.s32.totalorder %s23, 0
      %p121 = por %p119, %p120
      %p122 = scmp.ne.s32.totalorder %s110, %s111
      %p123 = scmp.eq.s32.totalorder %s24, 1
      %p124 = por %p122, %p123
      %p126 = scmp.ne.s32.totalorder %s111, %s125
      %p127 = scmp.eq.s32.totalorder %s24, 0
      %p128 = por %p126, %p127
      %s130 = sadd.s32 %s129, 1
      %p133 = scmp.eq.s32.totalorder %s18, 1
      %p134 = scmp.ne.s32.totalorder %s129, %s131
      %p135 = scmp.eq.s32.totalorder %s18, 0
      %p136 = por %p134, %p135
      %p137 = scmp.ne.s32.totalorder %s129, %s131
      %p138 = scmp.eq.s32.totalorder %s23, 1
      %p139 = por %p137, %p138
      %p140 = scmp.ne.s32.totalorder %s131, %s132
      %p141 = scmp.eq.s32.totalorder %s23, 0
      %p142 = por %p140, %p141
      %p143 = scmp.ne.s32.totalorder %s131, %s132
      %p144 = scmp.eq.s32.totalorder %s24, 1
      %p145 = por %p143, %p144
      %p147 = scmp.ne.s32.totalorder %s132, %s146
      %p148 = scmp.eq.s32.totalorder %s24, 0
      %p149 = por %p147, %p148
      %s150 = ssub.s32 %s25, %s37
      %s151 = ssub.s32 %s26, %s33
      %s152 = sor.u32 %s150, %s151
      %p153 = scmp.eq.s32.totalorder %s152, 0
      %s155 = sadd.s32 %s154, 1
      %s156 = scalar_select %p153, %s154, %s155
      %p159 = pneg %p153
      %p160 = scmp.eq.s32.totalorder %s18, 1
      %p161 = por %p159, %p160
      %p162 = scmp.ne.s32.totalorder %s154, %s157
      %p163 = scmp.eq.s32.totalorder %s18, 0
      %p164 = por %p162, %p163
      %p165 = scmp.ne.s32.totalorder %s154, %s157
      %p166 = scmp.eq.s32.totalorder %s23, 1
      %p167 = por %p165, %p166
      %p168 = scmp.ne.s32.totalorder %s157, %s158
      %p169 = scmp.eq.s32.totalorder %s23, 0
      %p170 = por %p168, %p169
      %p171 = scmp.ne.s32.totalorder %s157, %s158
      %p172 = scmp.eq.s32.totalorder %s24, 1
      %p173 = por %p171, %p172
      %p175 = scmp.ne.s32.totalorder %s158, %s174
      %p176 = scmp.eq.s32.totalorder %s24, 0
      %p177 = por %p175, %p176
      %p178 = scmp.le.s32.totalorder 1, %s18
      %p179 = scmp.lt.s32.totalorder %s18, 3
      %p180 = pnand %p178, %p179
      %p181 = pneg %p180
      // Predicated region
      $region9: #{tpu_custom_call.1} parent=5 // pred_check
        _
      $region10: #{tpu_custom_call.1} parent=5 // pred_check_branch
        %183 = sbr.rel (%p180) target = $region12
      $region11: #{tpu_custom_call.1} parent=5 // pred_region
        %s184 = ssub.s32 %s18, 1
        // Predicated region
        $region13: #{tpu_custom_call.1} parent=11 // pred_check
          %p185 = pneg %p79
        $region14: #{tpu_custom_call.1} parent=11 // pred_check_branch
          %187 = sbr.rel (%p185) target = $region16
        $region15: #{tpu_custom_call.1} parent=11 // pred_region
          %s189 = ssub.s32 256, 256
          %190 = vsyncadd [#allocation7], %s189
          %s191 = sshll.u32 [#allocation6], 4
          %s192 = int_to_ptr.vmem [resolvable:$true] %s191
          %197 = dma.hbm_to_vmem [thread:$0]  %s1, 256, %s192, [#allocation7], 64, 64, 4
        $region16: #{tpu_custom_call.1} parent=11 // pred_fallthru
          _
        // Predicated region
        $region17: #{tpu_custom_call.1} parent=11 // pred_check
          %p198 = pneg %p100
        $region18: #{tpu_custom_call.1} parent=11 // pred_check_branch
          %200 = sbr.rel (%p198) target = $region20
        $region19: #{tpu_custom_call.1} parent=11 // pred_region
          _
        $region20: #{tpu_custom_call.1} parent=11 // pred_fallthru
          _
        // Predicated region
        $region21: #{tpu_custom_call.1} parent=11 // pred_check
          %p201 = pneg %p121
        $region22: #{tpu_custom_call.1} parent=11 // pred_check_branch
          %203 = sbr.rel (%p201) target = $region24
        $region23: #{tpu_custom_call.1} parent=11 // pred_region
          %s205 = ssub.s32 4608, 4608
          %206 = vsyncadd [#allocation7], %s205
          %s207 = sshll.u32 [#allocation8], 4
          %s208 = int_to_ptr.vmem [resolvable:$true] %s207
          %213 = dma.hbm_to_vmem [thread:$0]  %s3, 4608, %s208, [#allocation7], 64, 64, 4
        $region24: #{tpu_custom_call.1} parent=11 // pred_fallthru
          _
        // Predicated region
        $region25: #{tpu_custom_call.1} parent=11 // pred_check
          %p214 = pneg %p142
        $region26: #{tpu_custom_call.1} parent=11 // pred_check_branch
          %216 = sbr.rel (%p214) target = $region28
        $region27: #{tpu_custom_call.1} parent=11 // pred_region
          _
        $region28: #{tpu_custom_call.1} parent=11 // pred_fallthru
          _
      $region12: #{tpu_custom_call.1} parent=5 // pred_fallthru
        _
      %p217 = scmp.lt.s32.totalorder %s18, 2
      // Predicated region
      $region29: #{tpu_custom_call.1} parent=5 // pred_check
        %p218 = pneg %p217
      $region30: #{tpu_custom_call.1} parent=5 // pred_check_branch
        %220 = sbr.rel (%p218) target = $region32
      $region31: #{tpu_custom_call.1} parent=5 // pred_region
        // Predicated region
        $region33: #{tpu_custom_call.1} parent=31 // pred_check
          %p221 = pneg %p52
        $region34: #{tpu_custom_call.1} parent=31 // pred_check_branch
          %223 = sbr.rel (%p221) target = $region36
        $region35: #{tpu_custom_call.1} parent=31 // pred_region
          %s224 = sand.u32 %s42, 1
          %s225 = scalar_lea.sflag [#allocation4], %s224
          %s226 = sand.u32 %s42, 1
          %s227 = smul.addr %s226, 144
          %s228 = scalar_lea.vmem [#allocation3], %s227
          %s230 = ssub.s32 2304, 2304
          %231 = vsyncadd %s225, %s230
          %s232 = smul.addr %s26, 36
          %s233 = smul.addr %s25, 36
          %s234 = sadd.s32 %s232, %s233
          %s235 = smul.addr %s234, 64
          %s236 = scalar_lea.hbm %s0, %s235
          %s237 = sshll.u32 %s228, 4
          %s238 = int_to_ptr.vmem [resolvable:$true] %s237
          %243 = dma.hbm_to_vmem [thread:$0]  %s236, 2304, %s238, %s225, 64, 64, 4
        $region36: #{tpu_custom_call.1} parent=31 // pred_fallthru
          _
      $region32: #{tpu_custom_call.1} parent=5 // pred_fallthru
        _
      %p244 = scmp.le.s32.totalorder 1, %s18
      %p245 = scmp.lt.s32.totalorder %s18, 3
      %p246 = pnand %p244, %p245
      %p247 = pneg %p246
      // Predicated region
      $region37: #{tpu_custom_call.1} parent=5 // pred_check
        _
      $region38: #{tpu_custom_call.1} parent=5 // pred_check_branch
        %249 = sbr.rel (%p246) target = $region40
      $region39: #{tpu_custom_call.1} parent=5 // pred_region
        %s250 = ssub.s32 %s18, 1
        %s251 = sand.u32 %s45, 1
        %s252 = scalar_lea.sflag [#allocation4], %s251
        %s253 = sand.u32 %s45, 1
        %s254 = smul.addr %s253, 144
        %s255 = scalar_lea.vmem [#allocation3], %s254
        // Predicated region
        $region41: #{tpu_custom_call.1} parent=39 // pred_check
          %p256 = pneg %p58
        $region42: #{tpu_custom_call.1} parent=39 // pred_check_branch
          %258 = sbr.rel (%p256) target = $region44
        $region43: #{tpu_custom_call.1} parent=39 // pred_region
          %259 = dma.done %s252, 2304
        $region44: #{tpu_custom_call.1} parent=39 // pred_fallthru
          _
        // Predicated region
        $region45: #{tpu_custom_call.1} parent=39 // pred_check
          %p260 = pneg %p79
        $region46: #{tpu_custom_call.1} parent=39 // pred_check_branch
          %262 = sbr.rel (%p260) target = $region48
        $region47: #{tpu_custom_call.1} parent=39 // pred_region
          %263 = dma.done [#allocation7], 256
        $region48: #{tpu_custom_call.1} parent=39 // pred_fallthru
          _
        // Predicated region
        $region49: #{tpu_custom_call.1} parent=39 // pred_check
          %p264 = pneg %p121
        $region50: #{tpu_custom_call.1} parent=39 // pred_check_branch
          %266 = sbr.rel (%p264) target = $region52
        $region51: #{tpu_custom_call.1} parent=39 // pred_region
          %267 = dma.done [#allocation7], 4608
        $region52: #{tpu_custom_call.1} parent=39 // pred_fallthru
          _
        %s268 = sand.u32 %s45, 1
        %s269 = scalar_lea.sflag [#allocation4], %s268
        %s270 = sand.u32 %s45, 1
        %s271 = smul.addr %s270, 144
        %s272 = scalar_lea.vmem [#allocation3], %s271
        %p273 = pneg %p58
        %p274 = pneg %p55
        %p275 = pneg %p79
        %p276 = pneg %p76
        %p277 = pneg %p100
        %p278 = pneg %p97
        %p279 = pneg %p121
        %p280 = pneg %p118
        %p281 = pneg %p142
        %p282 = pneg %p139
        %p283 = pneg %p170
        %p284 = pneg %p167
        %s285 = sand.u32 %s157, 1
        %s286 = scalar_lea.sflag [#allocation5], %s285
        %s287 = sand.u32 %s157, 1
        %s288 = smul.addr %s287, 256
        %s289 = scalar_lea.vmem [#allocation9], %s288
        %s290 = smul.u32 16, %s28
        %v292 = vld [vmem:[%s255] sm:$0xf]
        %v293 = vld [vmem:[%s255 + $0x4] sm:$0xf]
        %v294 = vld [vmem:[%s255 + $0x8] sm:$0xf]
        %v295 = vld [vmem:[%s255 + $0xc] sm:$0xf]
        %v296 = vld [vmem:[%s255 + $0x10] sm:$0xf]
        %v297 = vld [vmem:[%s255 + $0x14] sm:$0xf]
        %v298 = vld [vmem:[%s255 + $0x18] sm:$0xf]
        %v299 = vld [vmem:[%s255 + $0x1c] sm:$0xf]
        %v300 = vld [vmem:[%s255 + $0x20] sm:$0xf]
        %v301 = vld [vmem:[%s255 + $0x24] sm:$0xf]
        %v302 = vld [vmem:[%s255 + $0x28] sm:$0xf]
        %v303 = vld [vmem:[%s255 + $0x2c] sm:$0xf]
        %v304 = vld [vmem:[%s255 + $0x30] sm:$0xf]
        %v305 = vld [vmem:[%s255 + $0x34] sm:$0xf]
        %v306 = vld [vmem:[%s255 + $0x38] sm:$0xf]
        %v307 = vld [vmem:[%s255 + $0x3c] sm:$0xf]
        %v308 = vld [vmem:[%s255 + $0x40] sm:$0xf]
        %v309 = vld [vmem:[%s255 + $0x44] sm:$0xf]
        %v310 = vld [vmem:[%s255 + $0x48] sm:$0xf]
        %v311 = vld [vmem:[%s255 + $0x4c] sm:$0xf]
        %v312 = vld [vmem:[%s255 + $0x50] sm:$0xf]
        %v313 = vld [vmem:[%s255 + $0x54] sm:$0xf]
        %v314 = vld [vmem:[%s255 + $0x58] sm:$0xf]
        %v315 = vld [vmem:[%s255 + $0x5c] sm:$0xf]
        %v316 = vld [vmem:[%s255 + $0x60] sm:$0xf]
        %v317 = vld [vmem:[%s255 + $0x64] sm:$0xf]
        %v318 = vld [vmem:[%s255 + $0x68] sm:$0xf]
        %v319 = vld [vmem:[%s255 + $0x6c] sm:$0xf]
        %v320 = vld [vmem:[%s255 + $0x70] sm:$0xf]
        %v321 = vld [vmem:[%s255 + $0x74] sm:$0xf]
        %v322 = vld [vmem:[%s255 + $0x78] sm:$0xf]
        %v323 = vld [vmem:[%s255 + $0x7c] sm:$0xf]
        %v324 = vld [vmem:[%s255 + $0x80] sm:$0xf]
        %v325 = vld [vmem:[%s255 + $0x84] sm:$0xf]
        %v326 = vld [vmem:[%s255 + $0x88] sm:$0xf]
        %v327 = vld [vmem:[%s255 + $0x8c] sm:$0xf]
        %v328 = vld [vmem:[#allocation6] sm:$0xf]
        %v329 = vld [vmem:[#allocation6 + $0x4] sm:$0xf]
        %v330 = vld [vmem:[#allocation6 + $0x8] sm:$0xf]
        %v331 = vld [vmem:[#allocation6 + $0xc] sm:$0x3]
        %v332 = vld [vmem:[%s2] sm:$0x1]
        %v334 = vlaneseq
        %v335 = vshrl.u32 %v334, 7
        %v336 = vsub.s32 0, %v335
        %v337 = vrot.slane %v332, %v336
        %v375 = vunpack.c.l.b16 %v292
        %v376 = vunpack.c.l.b16 %v293
        %v377 = vunpack.c.l.b16 %v294
        %v378 = vunpack.c.l.b16 %v295
        %v379 = vunpack.c.l.b16 %v296
        %v380 = vunpack.c.l.b16 %v297
        %v381 = vunpack.c.l.b16 %v298
        %v382 = vunpack.c.l.b16 %v299
        %v383 = vunpack.c.l.b16 %v300
        %v384 = vunpack.c.l.b16 %v301
        %v385 = vunpack.c.l.b16 %v302
        %v386 = vunpack.c.l.b16 %v303
        %v387 = vunpack.c.l.b16 %v304
        %v388 = vunpack.c.l.b16 %v305
        %v389 = vunpack.c.l.b16 %v306
        %v390 = vunpack.c.l.b16 %v307
        %v391 = vunpack.c.l.b16 %v308
        %v392 = vunpack.c.l.b16 %v309
        %v393 = vunpack.c.l.b16 %v310
        %v394 = vunpack.c.l.b16 %v311
        %v395 = vunpack.c.l.b16 %v312
        %v396 = vunpack.c.l.b16 %v313
        %v397 = vunpack.c.l.b16 %v314
        %v398 = vunpack.c.l.b16 %v315
        %v399 = vunpack.c.l.b16 %v316
        %v400 = vunpack.c.l.b16 %v317
        %v401 = vunpack.c.l.b16 %v318
        %v402 = vunpack.c.l.b16 %v319
        %v403 = vunpack.c.l.b16 %v320
        %v404 = vunpack.c.l.b16 %v321
        %v405 = vunpack.c.l.b16 %v322
        %v406 = vunpack.c.l.b16 %v323
        %v407 = vunpack.c.l.b16 %v324
        %v408 = vunpack.c.l.b16 %v325
        %v409 = vunpack.c.l.b16 %v326
        %v410 = vunpack.c.l.b16 %v327
        %v411 = vpack.c.b16 %v376, %v375
        %v412 = vpack.c.b16 %v378, %v377
        %v413 = vpack.c.b16 %v380, %v379
        %v414 = vpack.c.b16 %v382, %v381
        %v415 = vpack.c.b16 %v384, %v383
        %v416 = vpack.c.b16 %v386, %v385
        %v417 = vpack.c.b16 %v388, %v387
        %v418 = vpack.c.b16 %v390, %v389
        %v419 = vpack.c.b16 %v392, %v391
        %v420 = vpack.c.b16 %v394, %v393
        %v421 = vpack.c.b16 %v396, %v395
        %v422 = vpack.c.b16 %v398, %v397
        %v423 = vpack.c.b16 %v400, %v399
        %v424 = vpack.c.b16 %v402, %v401
        %v425 = vpack.c.b16 %v404, %v403
        %v426 = vpack.c.b16 %v406, %v405
        %v427 = vpack.c.b16 %v408, %v407
        %v428 = vpack.c.b16 %v410, %v409
        %v433 = vunpack.c.l.b16 %v328
        %v434 = vunpack.c.l.b16 %v329
        %v435 = vunpack.c.l.b16 %v330
        %v436 = vunpack.c.l.b16 %v331
        %v437 = vpack.c.b16 %v434, %v433
        %v438 = vpack.c.b16 %v436, %v435
        %vm440 = vcmask 220160
        %v442 = vsel %vm440, %v411, 0
        %v445 = vsel %vm440, %v412, 0
        %v448 = vsel %vm440, %v413, 0
        %v451 = vsel %vm440, %v414, 0
        %v454 = vsel %vm440, %v415, 0
        %v457 = vsel %vm440, %v416, 0
        %v460 = vsel %vm440, %v417, 0
        %v463 = vsel %vm440, %v418, 0
        %v466 = vsel %vm440, %v419, 0
        %v469 = vsel %vm440, %v420, 0
        %v472 = vsel %vm440, %v421, 0
        %v475 = vsel %vm440, %v422, 0
        %v478 = vsel %vm440, %v423, 0
        %v481 = vsel %vm440, %v424, 0
        %v484 = vsel %vm440, %v425, 0
        %v487 = vsel %vm440, %v426, 0
        %v490 = vsel %vm440, %v427, 0
        %v493 = vsel %vm440, %v428, 0
        %vm495 = vcmask 1044480
        %vm496 = vcmask 1045504
        %v497 = vsel %vm495, 4294967295, 65535
        %v498 = vsel %vm496, %v497, 0
        %v500 = vand.u32 %v438, %v498
        %502 = vmatprep.subr.bf16.mxu0 0
        %503 = vmatpush1.bf16.msra.mxu0 %v437
        %504 = vmatprep.subr.bf16.mxu0 0
        %505 = vmatpush1.bf16.msra.mxu0 %v500
        %506 = vmatprep.subr.bf16.mxu0 0
        %507 = vmatpush1.bf16.msra.mxu0 0
        %508 = vmatprep.subr.bf16.mxu0 0
        %509 = vmatpush1.bf16.msra.mxu0 0
        %510 = vmatprep.subr.bf16.mxu0 0
        %511 = vmatpush1.bf16.msra.mxu0 0
        %512 = vmatprep.subr.bf16.mxu0 0
        %513 = vmatpush1.bf16.msra.mxu0 0
        %514 = vmatprep.subr.bf16.mxu0 0
        %515 = vmatpush1.bf16.msra.mxu0 0
        %516 = vmatprep.subr.bf16.mxu0 0
        %517 = vmatpush1.bf16.msra.mxu0 0
        %518 = vmatprep.subr.bf16.mxu0 0
        %519 = vmatpush1.bf16.msra.mxu0 0
        %520 = vmatprep.subr.bf16.mxu0 0
        %521 = vmatpush1.bf16.msra.mxu0 0
        %522 = vmatprep.subr.bf16.mxu0 0
        %523 = vmatpush1.bf16.msra.mxu0 0
        %524 = vmatprep.subr.bf16.mxu0 0
        %525 = vmatpush1.bf16.msra.mxu0 0
        %526 = vmatprep.subr.bf16.mxu0 0
        %527 = vmatpush1.bf16.msra.mxu0 0
        %528 = vmatprep.subr.bf16.mxu0 0
        %529 = vmatpush1.bf16.msra.mxu0 0
        %530 = vmatprep.subr.bf16.mxu0 0
        %531 = vmatpush1.bf16.msra.mxu0 0
        %532 = vmatprep.subr.bf16.mxu0 0
        %533 = vmatpush1.bf16.msra.mxu0 0
        %534 = vmatprep.mubr.bf16.mxu0 0
        %535 = vmatmul.mubr.bf16.gmra.mrb[0].mxu0 %v442
        %v536 = vpop.f32.mrb[0].mxu0
        %v537 = vadd.f32 %v337, %v536
        %v538 = vpop.f32.mrb[0].mxu0
        %v539 = vpop.f32.mrb[0].mxu0
        %v540 = vadd.f32 %v337, %v539
        %v541 = vpop.f32.mrb[0].mxu0
        %542 = vmatprep.mubr.bf16.mxu0 0
        %543 = vmatmul.mubr.bf16.gmra.mrb[0].mxu0 %v445
        %v544 = vpop.f32.mrb[0].mxu0
        %v545 = vadd.f32 %v337, %v544
        %v546 = vpop.f32.mrb[0].mxu0
        %v547 = vpop.f32.mrb[0].mxu0
        %v548 = vadd.f32 %v337, %v547
        %v549 = vpop.f32.mrb[0].mxu0
        %550 = vmatprep.mubr.bf16.mxu0 0
        %551 = vmatmul.mubr.bf16.gmra.mrb[0].mxu0 %v448
        %v552 = vpop.f32.mrb[0].mxu0
        %v553 = vadd.f32 %v337, %v552
        %v554 = vpop.f32.mrb[0].mxu0
        %v555 = vpop.f32.mrb[0].mxu0
        %v556 = vadd.f32 %v337, %v555
        %v557 = vpop.f32.mrb[0].mxu0
        %558 = vmatprep.mubr.bf16.mxu0 0
        %559 = vmatmul.mubr.bf16.gmra.mrb[0].mxu0 %v451
        %v560 = vpop.f32.mrb[0].mxu0
        %v561 = vadd.f32 %v337, %v560
        %v562 = vpop.f32.mrb[0].mxu0
        %v563 = vpop.f32.mrb[0].mxu0
        %v564 = vadd.f32 %v337, %v563
        %v565 = vpop.f32.mrb[0].mxu0
        %566 = vmatprep.mubr.bf16.mxu0 0
        %567 = vmatmul.mubr.bf16.gmra.mrb[0].mxu0 %v454
        %v568 = vpop.f32.mrb[0].mxu0
        %v569 = vadd.f32 %v337, %v568
        %v570 = vpop.f32.mrb[0].mxu0
        %v571 = vpop.f32.mrb[0].mxu0
        %v572 = vadd.f32 %v337, %v571
        %v573 = vpop.f32.mrb[0].mxu0
        %574 = vmatprep.mubr.bf16.mxu0 0
        %575 = vmatmul.mubr.bf16.gmra.mrb[0].mxu0 %v457
        %v576 = vpop.f32.mrb[0].mxu0
        %v577 = vadd.f32 %v337, %v576
        %v578 = vpop.f32.mrb[0].mxu0
        %v579 = vpop.f32.mrb[0].mxu0
        %v580 = vadd.f32 %v337, %v579
        %v581 = vpop.f32.mrb[0].mxu0
        %582 = vmatprep.mubr.bf16.mxu0 0
        %583 = vmatmul.mubr.bf16.gmra.mrb[0].mxu0 %v460
        %v584 = vpop.f32.mrb[0].mxu0
        %v585 = vadd.f32 %v337, %v584
        %v586 = vpop.f32.mrb[0].mxu0
        %v587 = vpop.f32.mrb[0].mxu0
        %v588 = vadd.f32 %v337, %v587
        %v589 = vpop.f32.mrb[0].mxu0
        %590 = vmatprep.mubr.bf16.mxu0 0
        %591 = vmatmul.mubr.bf16.gmra.mrb[0].mxu0 %v463
        %v592 = vpop.f32.mrb[0].mxu0
        %v593 = vadd.f32 %v337, %v592
        %v594 = vpop.f32.mrb[0].mxu0
        %v595 = vpop.f32.mrb[0].mxu0
        %v596 = vadd.f32 %v337, %v595
        %v597 = vpop.f32.mrb[0].mxu0
        %598 = vmatprep.mubr.bf16.mxu0 0
        %599 = vmatmul.mubr.bf16.gmra.mrb[0].mxu0 %v466
        %v600 = vpop.f32.mrb[0].mxu0
        %v601 = vadd.f32 %v337, %v600
        %v602 = vpop.f32.mrb[0].mxu0
        %v603 = vpop.f32.mrb[0].mxu0
        %v604 = vadd.f32 %v337, %v603
        %v605 = vpop.f32.mrb[0].mxu0
        %606 = vmatprep.mubr.bf16.mxu0 0
        %607 = vmatmul.mubr.bf16.gmra.mrb[0].mxu0 %v469
        %v608 = vpop.f32.mrb[0].mxu0
        %v609 = vadd.f32 %v337, %v608
        %v610 = vpop.f32.mrb[0].mxu0
        %v611 = vpop.f32.mrb[0].mxu0
        %v612 = vadd.f32 %v337, %v611
        %v613 = vpop.f32.mrb[0].mxu0
        %614 = vmatprep.mubr.bf16.mxu0 0
        %615 = vmatmul.mubr.bf16.gmra.mrb[0].mxu0 %v472
        %v616 = vpop.f32.mrb[0].mxu0
        %v617 = vadd.f32 %v337, %v616
        %v618 = vpop.f32.mrb[0].mxu0
        %v619 = vpop.f32.mrb[0].mxu0
        %v620 = vadd.f32 %v337, %v619
        %v621 = vpop.f32.mrb[0].mxu0
        %622 = vmatprep.mubr.bf16.mxu0 0
        %623 = vmatmul.mubr.bf16.gmra.mrb[0].mxu0 %v475
        %v624 = vpop.f32.mrb[0].mxu0
        %v625 = vadd.f32 %v337, %v624
        %v626 = vpop.f32.mrb[0].mxu0
        %v627 = vpop.f32.mrb[0].mxu0
        %v628 = vadd.f32 %v337, %v627
        %v629 = vpop.f32.mrb[0].mxu0
        %630 = vmatprep.mubr.bf16.mxu0 0
        %631 = vmatmul.mubr.bf16.gmra.mrb[0].mxu0 %v478
        %v632 = vpop.f32.mrb[0].mxu0
        %v633 = vadd.f32 %v337, %v632
        %v634 = vpop.f32.mrb[0].mxu0
        %v635 = vpop.f32.mrb[0].mxu0
        %v636 = vadd.f32 %v337, %v635
        %v637 = vpop.f32.mrb[0].mxu0
        %638 = vmatprep.mubr.bf16.mxu0 0
        %639 = vmatmul.mubr.bf16.gmra.mrb[0].mxu0 %v481
        %v640 = vpop.f32.mrb[0].mxu0
        %v641 = vadd.f32 %v337, %v640
        %v642 = vpop.f32.mrb[0].mxu0
        %v643 = vpop.f32.mrb[0].mxu0
        %v644 = vadd.f32 %v337, %v643
        %v645 = vpop.f32.mrb[0].mxu0
        %646 = vmatprep.mubr.bf16.mxu0 0
        %647 = vmatmul.mubr.bf16.gmra.mrb[0].mxu0 %v484
        %v648 = vpop.f32.mrb[0].mxu0
        %v649 = vadd.f32 %v337, %v648
        %v650 = vpop.f32.mrb[0].mxu0
        %v651 = vpop.f32.mrb[0].mxu0
        %v652 = vadd.f32 %v337, %v651
        %v653 = vpop.f32.mrb[0].mxu0
        %654 = vmatprep.mubr.bf16.mxu0 0
        %655 = vmatmul.mubr.bf16.gmra.mrb[0].mxu0 %v487
        %v656 = vpop.f32.mrb[0].mxu0
        %v657 = vadd.f32 %v337, %v656
        %v658 = vpop.f32.mrb[0].mxu0
        %v659 = vpop.f32.mrb[0].mxu0
        %v660 = vadd.f32 %v337, %v659
        %v661 = vpop.f32.mrb[0].mxu0
        %662 = vmatprep.mubr.bf16.mxu0 0
        %663 = vmatmul.mubr.bf16.gmra.mrb[0].mxu0 %v490
        %v664 = vpop.f32.mrb[0].mxu0
        %v665 = vadd.f32 %v337, %v664
        %v666 = vpop.f32.mrb[0].mxu0
        %v667 = vpop.f32.mrb[0].mxu0
        %v668 = vadd.f32 %v337, %v667
        %v669 = vpop.f32.mrb[0].mxu0
        %670 = vmatprep.mubr.bf16.mxu0 0
        %671 = vmatmul.mubr.bf16.gmra.mrb[0].mxu0 %v493
        %v672 = vpop.f32.mrb[0].mxu0
        %v673 = vadd.f32 %v337, %v672
        %v674 = vpop.f32.mrb[0].mxu0
        %v675 = vpop.f32.mrb[0].mxu0
        %v676 = vadd.f32 %v337, %v675
        %v677 = vpop.f32.mrb[0].mxu0
        %678 = vdwg.mxu0
        %v679 = vmax.f32 %v537, 0.0
        %v680 = vmax.f32 %v540, 0.0
        %v681 = vmax.f32 %v545, 0.0
        %v682 = vmax.f32 %v548, 0.0
        %v683 = vmax.f32 %v553, 0.0
        %v684 = vmax.f32 %v556, 0.0
        %v685 = vmax.f32 %v561, 0.0
        %v686 = vmax.f32 %v564, 0.0
        %v687 = vmax.f32 %v569, 0.0
        %v688 = vmax.f32 %v572, 0.0
        %v689 = vmax.f32 %v577, 0.0
        %v690 = vmax.f32 %v580, 0.0
        %v691 = vmax.f32 %v585, 0.0
        %v692 = vmax.f32 %v588, 0.0
        %v693 = vmax.f32 %v593, 0.0
        %v694 = vmax.f32 %v596, 0.0
        %v695 = vmax.f32 %v601, 0.0
        %v696 = vmax.f32 %v604, 0.0
        %v697 = vmax.f32 %v609, 0.0
        %v698 = vmax.f32 %v612, 0.0
        %v699 = vmax.f32 %v617, 0.0
        %v700 = vmax.f32 %v620, 0.0
        %v701 = vmax.f32 %v625, 0.0
        %v702 = vmax.f32 %v628, 0.0
        %v703 = vmax.f32 %v633, 0.0
        %v704 = vmax.f32 %v636, 0.0
        %v705 = vmax.f32 %v641, 0.0
        %v706 = vmax.f32 %v644, 0.0
        %v707 = vmax.f32 %v649, 0.0
        %v708 = vmax.f32 %v652, 0.0
        %v709 = vmax.f32 %v657, 0.0
        %v710 = vmax.f32 %v660, 0.0
        %v711 = vmax.f32 %v665, 0.0
        %v712 = vmax.f32 %v668, 0.0
        %v713 = vmax.f32 %v673, 0.0
        %v714 = vmax.f32 %v676, 0.0
        %v715 = vpack.c.bf16 %v680, %v679
        %v716 = vpack.c.bf16 %v682, %v681
        %v717 = vpack.c.bf16 %v684, %v683
        %v718 = vpack.c.bf16 %v686, %v685
        %v719 = vpack.c.bf16 %v688, %v687
        %v720 = vpack.c.bf16 %v690, %v689
        %v721 = vpack.c.bf16 %v692, %v691
        %v722 = vpack.c.bf16 %v694, %v693
        %v723 = vpack.c.bf16 %v696, %v695
        %v724 = vpack.c.bf16 %v698, %v697
        %v725 = vpack.c.bf16 %v700, %v699
        %v726 = vpack.c.bf16 %v702, %v701
        %v727 = vpack.c.bf16 %v704, %v703
        %v728 = vpack.c.bf16 %v706, %v705
        %v729 = vpack.c.bf16 %v708, %v707
        %v730 = vpack.c.bf16 %v710, %v709
        %v731 = vpack.c.bf16 %v712, %v711
        %v732 = vpack.c.bf16 %v714, %v713
        %v734 = vshrl.u32 %v715, 16
        %v736 = vrot.slane %v734, 7
        %v737 = vshll.u32 %v715, 16
        %v739 = vor.u32 %v736, %v737
        %v741 = vshrl.u32 %v716, 16
        %v743 = vrot.slane %v741, 7
        %v744 = vshll.u32 %v716, 16
        %v746 = vor.u32 %v743, %v744
        %v748 = vshrl.u32 %v717, 16
        %v750 = vrot.slane %v748, 7
        %v751 = vshll.u32 %v717, 16
        %v753 = vor.u32 %v750, %v751
        %v755 = vshrl.u32 %v718, 16
        %v757 = vrot.slane %v755, 7
        %v758 = vshll.u32 %v718, 16
        %v760 = vor.u32 %v757, %v758
        %v762 = vshrl.u32 %v719, 16
        %v764 = vrot.slane %v762, 7
        %v765 = vshll.u32 %v719, 16
        %v767 = vor.u32 %v764, %v765
        %v769 = vshrl.u32 %v720, 16
        %v771 = vrot.slane %v769, 7
        %v772 = vshll.u32 %v720, 16
        %v774 = vor.u32 %v771, %v772
        %v776 = vshrl.u32 %v721, 16
        %v778 = vrot.slane %v776, 7
        %v779 = vshll.u32 %v721, 16
        %v781 = vor.u32 %v778, %v779
        %v783 = vshrl.u32 %v722, 16
        %v785 = vrot.slane %v783, 7
        %v786 = vshll.u32 %v722, 16
        %v788 = vor.u32 %v785, %v786
        %v790 = vshrl.u32 %v723, 16
        %v792 = vrot.slane %v790, 7
        %v793 = vshll.u32 %v723, 16
        %v795 = vor.u32 %v792, %v793
        %v797 = vshrl.u32 %v724, 16
        %v799 = vrot.slane %v797, 7
        %v800 = vshll.u32 %v724, 16
        %v802 = vor.u32 %v799, %v800
        %v804 = vshrl.u32 %v725, 16
        %v806 = vrot.slane %v804, 7
        %v807 = vshll.u32 %v725, 16
        %v809 = vor.u32 %v806, %v807
        %v811 = vshrl.u32 %v726, 16
        %v813 = vrot.slane %v811, 7
        %v814 = vshll.u32 %v726, 16
        %v816 = vor.u32 %v813, %v814
        %v818 = vshrl.u32 %v727, 16
        %v820 = vrot.slane %v818, 7
        %v821 = vshll.u32 %v727, 16
        %v823 = vor.u32 %v820, %v821
        %v825 = vshrl.u32 %v728, 16
        %v827 = vrot.slane %v825, 7
        %v828 = vshll.u32 %v728, 16
        %v830 = vor.u32 %v827, %v828
        %v832 = vshrl.u32 %v729, 16
        %v834 = vrot.slane %v832, 7
        %v835 = vshll.u32 %v729, 16
        %v837 = vor.u32 %v834, %v835
        %v839 = vshrl.u32 %v730, 16
        %v841 = vrot.slane %v839, 7
        %v842 = vshll.u32 %v730, 16
        %v844 = vor.u32 %v841, %v842
        %v846 = vshrl.u32 %v731, 16
        %v848 = vrot.slane %v846, 7
        %v849 = vshll.u32 %v731, 16
        %v851 = vor.u32 %v848, %v849
        %v853 = vshrl.u32 %v732, 16
        %v855 = vrot.slane %v853, 7
        %v856 = vshll.u32 %v732, 16
        %v858 = vor.u32 %v855, %v856
        %vm877 = vcmask 1040384
        %vm878 = vsmask.f32 256
        %vm879 = vmand %vm877, %vm878
        %v880 = vsel %vm879, 0, %v739
        %v881 = vsel %vm879, 0, %v746
        %v882 = vsel %vm879, 0, %v753
        %v883 = vsel %vm879, 0, %v760
        %v884 = vsel %vm879, 0, %v767
        %v885 = vsel %vm879, 0, %v774
        %v886 = vsel %vm879, 0, %v781
        %v887 = vsel %vm879, 0, %v788
        %v888 = vsel %vm879, 0, %v795
        %v889 = vsel %vm879, 0, %v802
        %v890 = vsel %vm879, 0, %v809
        %v891 = vsel %vm879, 0, %v816
        %v892 = vsel %vm879, 0, %v823
        %v893 = vsel %vm879, 0, %v830
        %v894 = vsel %vm879, 0, %v837
        %v895 = vsel %vm879, 0, %v844
        %v896 = vsel %vm879, 0, %v851
        %v897 = vsel %vm879, 0, %v858
        %v898 = vrot.slane %v737, 1
        %v899 = vor.u32 %v734, %v898
        %v900 = vrot.slane %v744, 1
        %v901 = vor.u32 %v741, %v900
        %v902 = vrot.slane %v751, 1
        %v903 = vor.u32 %v748, %v902
        %v904 = vrot.slane %v758, 1
        %v905 = vor.u32 %v755, %v904
        %v906 = vrot.slane %v765, 1
        %v907 = vor.u32 %v762, %v906
        %v908 = vrot.slane %v772, 1
        %v909 = vor.u32 %v769, %v908
        %v910 = vrot.slane %v779, 1
        %v911 = vor.u32 %v776, %v910
        %v912 = vrot.slane %v786, 1
        %v913 = vor.u32 %v783, %v912
        %v914 = vrot.slane %v793, 1
        %v915 = vor.u32 %v790, %v914
        %v916 = vrot.slane %v800, 1
        %v917 = vor.u32 %v797, %v916
        %v918 = vrot.slane %v807, 1
        %v919 = vor.u32 %v804, %v918
        %v920 = vrot.slane %v814, 1
        %v921 = vor.u32 %v811, %v920
        %v922 = vrot.slane %v821, 1
        %v923 = vor.u32 %v818, %v922
        %v924 = vrot.slane %v828, 1
        %v925 = vor.u32 %v825, %v924
        %v926 = vrot.slane %v835, 1
        %v927 = vor.u32 %v832, %v926
        %v928 = vrot.slane %v842, 1
        %v929 = vor.u32 %v839, %v928
        %v930 = vrot.slane %v849, 1
        %v931 = vor.u32 %v846, %v930
        %v932 = vrot.slane %v856, 1
        %v933 = vor.u32 %v853, %v932
        %vm952 = vcmask 1047552
        %vm953 = vsmask.f32 7424
        %vm954 = vmand %vm952, %vm953
        %v955 = vsel %vm954, %v899, 0
        %v956 = vsel %vm954, %v901, 0
        %v957 = vsel %vm954, %v903, 0
        %v958 = vsel %vm954, %v905, 0
        %v959 = vsel %vm954, %v907, 0
        %v960 = vsel %vm954, %v909, 0
        %v961 = vsel %vm954, %v911, 0
        %v962 = vsel %vm954, %v913, 0
        %v963 = vsel %vm954, %v915, 0
        %v964 = vsel %vm954, %v917, 0
        %v965 = vsel %vm954, %v919, 0
        %v966 = vsel %vm954, %v921, 0
        %v967 = vsel %vm954, %v923, 0
        %v968 = vsel %vm954, %v925, 0
        %v969 = vsel %vm954, %v927, 0
        %v970 = vsel %vm954, %v929, 0
        %v971 = vsel %vm954, %v931, 0
        %v972 = vsel %vm954, %v933, 0
        %991 = vrot.lane.b32.xlu0 %v880, 64
        %v992 = vpop.permute.xlu0 %991
        %993 = vrot.lane.b32.xlu0 %v881, 64
        %v994 = vpop.permute.xlu0 %993
        %995 = vrot.lane.b32.xlu0 %v882, 64
        %v996 = vpop.permute.xlu0 %995
        %997 = vrot.lane.b32.xlu0 %v883, 64
        %v998 = vpop.permute.xlu0 %997
        %999 = vrot.lane.b32.xlu0 %v884, 64
        %v1000 = vpop.permute.xlu0 %999
        %1001 = vrot.lane.b32.xlu0 %v885, 64
        %v1002 = vpop.permute.xlu0 %1001
        %1003 = vrot.lane.b32.xlu0 %v886, 64
        %v1004 = vpop.permute.xlu0 %1003
        %1005 = vrot.lane.b32.xlu0 %v887, 64
        %v1006 = vpop.permute.xlu0 %1005
        %1007 = vrot.lane.b32.xlu0 %v888, 64
        %v1008 = vpop.permute.xlu0 %1007
        %1009 = vrot.lane.b32.xlu0 %v889, 64
        %v1010 = vpop.permute.xlu0 %1009
        %1011 = vrot.lane.b32.xlu0 %v890, 64
        %v1012 = vpop.permute.xlu0 %1011
        %1013 = vrot.lane.b32.xlu0 %v891, 64
        %v1014 = vpop.permute.xlu0 %1013
        %1015 = vrot.lane.b32.xlu0 %v892, 64
        %v1016 = vpop.permute.xlu0 %1015
        %1017 = vrot.lane.b32.xlu0 %v893, 64
        %v1018 = vpop.permute.xlu0 %1017
        %1019 = vrot.lane.b32.xlu0 %v894, 64
        %v1020 = vpop.permute.xlu0 %1019
        %1021 = vrot.lane.b32.xlu0 %v895, 64
        %v1022 = vpop.permute.xlu0 %1021
        %1023 = vrot.lane.b32.xlu0 %v896, 64
        %v1024 = vpop.permute.xlu0 %1023
        %1025 = vrot.lane.b32.xlu0 %v897, 64
        %v1026 = vpop.permute.xlu0 %1025
        %vm1027 = vcmask 523264
        %v1029 = vsel %vm1027, %v715, %v992
        %v1032 = vsel %vm1027, %v716, %v994
        %v1035 = vsel %vm1027, %v717, %v996
        %v1038 = vsel %vm1027, %v718, %v998
        %v1041 = vsel %vm1027, %v719, %v1000
        %v1044 = vsel %vm1027, %v720, %v1002
        %v1047 = vsel %vm1027, %v721, %v1004
        %v1050 = vsel %vm1027, %v722, %v1006
        %v1053 = vsel %vm1027, %v723, %v1008
        %v1056 = vsel %vm1027, %v724, %v1010
        %v1059 = vsel %vm1027, %v725, %v1012
        %v1062 = vsel %vm1027, %v726, %v1014
        %v1065 = vsel %vm1027, %v727, %v1016
        %v1068 = vsel %vm1027, %v728, %v1018
        %v1071 = vsel %vm1027, %v729, %v1020
        %v1074 = vsel %vm1027, %v730, %v1022
        %v1077 = vsel %vm1027, %v731, %v1024
        %v1080 = vsel %vm1027, %v732, %v1026
        %1082 = vst [vmem:[#allocation2] sm:$0xff] %v1029
        %1083 = vst [vmem:[#allocation2 + $0x10] sm:$0xff] %v1032
        %1084 = vst [vmem:[#allocation2 + $0x20] sm:$0xff] %v1035
        %1085 = vst [vmem:[#allocation2 + $0x30] sm:$0xff] %v1038
        %1086 = vst [vmem:[#allocation2 + $0x40] sm:$0xff] %v1041
        %1087 = vst [vmem:[#allocation2 + $0x50] sm:$0xff] %v1044
        %1088 = vst [vmem:[#allocation2 + $0x60] sm:$0xff] %v1047
        %1089 = vst [vmem:[#allocation2 + $0x70] sm:$0xff] %v1050
        %1090 = vst [vmem:[#allocation2 + $0x80] sm:$0xff] %v1053
        %1091 = vst [vmem:[#allocation2 + $0x90] sm:$0xff] %v1056
        %1092 = vst [vmem:[#allocation2 + $0xa0] sm:$0xff] %v1059
        %1093 = vst [vmem:[#allocation2 + $0xb0] sm:$0xff] %v1062
        %1094 = vst [vmem:[#allocation2 + $0xc0] sm:$0xff] %v1065
        %1095 = vst [vmem:[#allocation2 + $0xd0] sm:$0xff] %v1068
        %1096 = vst [vmem:[#allocation2 + $0xe0] sm:$0xff] %v1071
        %1097 = vst [vmem:[#allocation2 + $0xf0] sm:$0xff] %v1074
        %1098 = vst [vmem:[#allocation2 + $0x100] sm:$0xff] %v1077
        %1099 = vst [vmem:[#allocation2 + $0x110] sm:$0xff] %v1080
        %1100 = vst.msk [vmem:[#allocation2 + $0x8] sm:$0xff] %vm1027, %v955
        %1101 = vst.msk [vmem:[#allocation2 + $0x18] sm:$0xff] %vm1027, %v956
        %1102 = vst.msk [vmem:[#allocation2 + $0x28] sm:$0xff] %vm1027, %v957
        %1103 = vst.msk [vmem:[#allocation2 + $0x38] sm:$0xff] %vm1027, %v958
        %1104 = vst.msk [vmem:[#allocation2 + $0x48] sm:$0xff] %vm1027, %v959
        %1105 = vst.msk [vmem:[#allocation2 + $0x58] sm:$0xff] %vm1027, %v960
        %1106 = vst.msk [vmem:[#allocation2 + $0x68] sm:$0xff] %vm1027, %v961
        %1107 = vst.msk [vmem:[#allocation2 + $0x78] sm:$0xff] %vm1027, %v962
        %1108 = vst.msk [vmem:[#allocation2 + $0x88] sm:$0xff] %vm1027, %v963
        %1109 = vst.msk [vmem:[#allocation2 + $0x98] sm:$0xff] %vm1027, %v964
        %1110 = vst.msk [vmem:[#allocation2 + $0xa8] sm:$0xff] %vm1027, %v965
        %1111 = vst.msk [vmem:[#allocation2 + $0xb8] sm:$0xff] %vm1027, %v966
        %1112 = vst.msk [vmem:[#allocation2 + $0xc8] sm:$0xff] %vm1027, %v967
        %1113 = vst.msk [vmem:[#allocation2 + $0xd8] sm:$0xff] %vm1027, %v968
        %1114 = vst.msk [vmem:[#allocation2 + $0xe8] sm:$0xff] %vm1027, %v969
        %1115 = vst.msk [vmem:[#allocation2 + $0xf8] sm:$0xff] %vm1027, %v970
        %1116 = vst.msk [vmem:[#allocation2 + $0x108] sm:$0xff] %vm1027, %v971
        %1117 = vst.msk [vmem:[#allocation2 + $0x118] sm:$0xff] %vm1027, %v972
        %p1118 = scmp.eq.s32.totalorder %s28, 0
        // Predicated region
        $region53: #{tpu_custom_call.1} parent=39 // pred_check
          %p1119 = pneg %p1118
        $region54: #{tpu_custom_call.1} parent=39 // pred_check_branch
          %1121 = sbr.rel (%p1119) target = $region56
        $region55: #{tpu_custom_call.1} parent=39 // pred_region
          %1122 = vst [vmem:[#allocation2] sm:$0xff] 0
          %1123 = vst.msk [vmem:[#allocation2 + $0x8] sm:$0xff] %vm1027, 0
          %1124 = vst [vmem:[#allocation2 + $0x110] sm:$0xff] 0
          %1125 = vst.msk [vmem:[#allocation2 + $0x118] sm:$0xff] %vm1027, 0
        $region56: #{tpu_custom_call.1} parent=39 // pred_fallthru
          _
        %v1126 = vld [vmem:[#allocation2] sm:$0xff]
        %v1127 = vld [vmem:[#allocation2 + $0x8] sm:$0xff]
        %v1128 = vld [vmem:[#allocation2 + $0x10] sm:$0xff]
        %v1129 = vld [vmem:[#allocation2 + $0x18] sm:$0xff]
        %v1130 = vld [vmem:[#allocation2 + $0x20] sm:$0xff]
        %v1131 = vld [vmem:[#allocation2 + $0x28] sm:$0xff]
        %v1132 = vld [vmem:[#allocation2 + $0x30] sm:$0xff]
        %v1133 = vld [vmem:[#allocation2 + $0x38] sm:$0xff]
        %v1134 = vld [vmem:[#allocation2 + $0x40] sm:$0xff]
        %v1135 = vld [vmem:[#allocation2 + $0x48] sm:$0xff]
        %v1136 = vld [vmem:[#allocation2 + $0x50] sm:$0xff]
        %v1137 = vld [vmem:[#allocation2 + $0x58] sm:$0xff]
        %v1138 = vld [vmem:[#allocation2 + $0x60] sm:$0xff]
        %v1139 = vld [vmem:[#allocation2 + $0x68] sm:$0xff]
        %v1140 = vld [vmem:[#allocation2 + $0x70] sm:$0xff]
        %v1141 = vld [vmem:[#allocation2 + $0x78] sm:$0xff]
        %v1142 = vld [vmem:[#allocation2 + $0x80] sm:$0xff]
        %v1143 = vld [vmem:[#allocation2 + $0x88] sm:$0xff]
        %v1144 = vld [vmem:[#allocation2 + $0x90] sm:$0xff]
        %v1145 = vld [vmem:[#allocation2 + $0x98] sm:$0xff]
        %v1146 = vld [vmem:[#allocation2 + $0xa0] sm:$0xff]
        %v1147 = vld [vmem:[#allocation2 + $0xa8] sm:$0xff]
        %v1148 = vld [vmem:[#allocation2 + $0xb0] sm:$0xff]
        %v1149 = vld [vmem:[#allocation2 + $0xb8] sm:$0xff]
        %v1150 = vld [vmem:[#allocation2 + $0xc0] sm:$0xff]
        %v1151 = vld [vmem:[#allocation2 + $0xc8] sm:$0xff]
        %v1152 = vld [vmem:[#allocation2 + $0xd0] sm:$0xff]
        %v1153 = vld [vmem:[#allocation2 + $0xd8] sm:$0xff]
        %v1154 = vld [vmem:[#allocation2 + $0xe0] sm:$0xff]
        %v1155 = vld [vmem:[#allocation2 + $0xe8] sm:$0xff]
        %v1156 = vld [vmem:[#allocation2 + $0xf0] sm:$0xff]
        %v1157 = vld [vmem:[#allocation2 + $0xf8] sm:$0xff]
        %v1158 = vld [vmem:[#allocation8] sm:$0xf]
        %v1159 = vld [vmem:[#allocation8 + $0x4] sm:$0xf]
        %v1160 = vld [vmem:[#allocation8 + $0x8] sm:$0xf]
        %v1161 = vld [vmem:[#allocation8 + $0xc] sm:$0xf]
        %v1162 = vld [vmem:[#allocation8 + $0x10] sm:$0xf]
        %v1163 = vld [vmem:[#allocation8 + $0x14] sm:$0xf]
        %v1164 = vld [vmem:[#allocation8 + $0x18] sm:$0xf]
        %v1165 = vld [vmem:[#allocation8 + $0x1c] sm:$0xf]
        %v1166 = vld [vmem:[#allocation8 + $0x20] sm:$0xf]
        %v1167 = vld [vmem:[#allocation8 + $0x24] sm:$0xf]
        %v1168 = vld [vmem:[#allocation8 + $0x28] sm:$0xf]
        %v1169 = vld [vmem:[#allocation8 + $0x2c] sm:$0xf]
        %v1170 = vld [vmem:[#allocation8 + $0x30] sm:$0xf]
        %v1171 = vld [vmem:[#allocation8 + $0x34] sm:$0xf]
        %v1172 = vld [vmem:[#allocation8 + $0x38] sm:$0xf]
        %v1173 = vld [vmem:[#allocation8 + $0x3c] sm:$0xf]
        %v1174 = vld [vmem:[#allocation8 + $0x40] sm:$0xf]
        %v1175 = vld [vmem:[#allocation8 + $0x44] sm:$0xf]
        %v1176 = vld [vmem:[#allocation8 + $0x48] sm:$0xf]
        %v1177 = vld [vmem:[#allocation8 + $0x4c] sm:$0xf]
        %v1178 = vld [vmem:[#allocation8 + $0x50] sm:$0xf]
        %v1179 = vld [vmem:[#allocation8 + $0x54] sm:$0xf]
        %v1180 = vld [vmem:[#allocation8 + $0x58] sm:$0xf]
        %v1181 = vld [vmem:[#allocation8 + $0x5c] sm:$0xf]
        %v1182 = vld [vmem:[#allocation2 + $0x100] sm:$0xff]
        %v1183 = vld [vmem:[#allocation2 + $0x108] sm:$0xff]
        %s1184 = scalar_lea.vmem [#allocation8], 96
        %v1185 = vld [vmem:[%s1184] sm:$0xf]
        %v1186 = vld [vmem:[%s1184 + $0x4] sm:$0xf]
        %v1187 = vld [vmem:[%s1184 + $0x8] sm:$0xf]
        %v1188 = vld [vmem:[%s1184 + $0xc] sm:$0xf]
        %v1189 = vld [vmem:[%s1184 + $0x10] sm:$0xf]
        %v1190 = vld [vmem:[%s1184 + $0x14] sm:$0xf]
        %v1191 = vld [vmem:[%s1184 + $0x18] sm:$0xf]
        %v1192 = vld [vmem:[%s1184 + $0x1c] sm:$0xf]
        %v1193 = vld [vmem:[%s1184 + $0x20] sm:$0xf]
        %v1194 = vld [vmem:[%s1184 + $0x24] sm:$0xf]
        %v1195 = vld [vmem:[%s1184 + $0x28] sm:$0xf]
        %v1196 = vld [vmem:[%s1184 + $0x2c] sm:$0xf]
        %v1197 = vld [vmem:[%s1184 + $0x30] sm:$0xf]
        %v1198 = vld [vmem:[%s1184 + $0x34] sm:$0xf]
        %v1199 = vld [vmem:[%s1184 + $0x38] sm:$0xf]
        %v1200 = vld [vmem:[%s1184 + $0x3c] sm:$0xf]
        %v1201 = vld [vmem:[%s1184 + $0x40] sm:$0xf]
        %v1202 = vld [vmem:[%s1184 + $0x44] sm:$0xf]
        %v1203 = vld [vmem:[%s1184 + $0x48] sm:$0xf]
        %v1204 = vld [vmem:[%s1184 + $0x4c] sm:$0xf]
        %v1205 = vld [vmem:[%s1184 + $0x50] sm:$0xf]
        %v1206 = vld [vmem:[%s1184 + $0x54] sm:$0xf]
        %v1207 = vld [vmem:[%s1184 + $0x58] sm:$0xf]
        %v1208 = vld [vmem:[%s1184 + $0x5c] sm:$0xf]
        %v1233 = vunpack.c.l.b16 %v1185
        %v1234 = vunpack.c.l.b16 %v1186
        %v1235 = vunpack.c.l.b16 %v1187
        %v1236 = vunpack.c.l.b16 %v1188
        %v1237 = vunpack.c.l.b16 %v1189
        %v1238 = vunpack.c.l.b16 %v1190
        %v1239 = vunpack.c.l.b16 %v1191
        %v1240 = vunpack.c.l.b16 %v1192
        %v1241 = vunpack.c.l.b16 %v1193
        %v1242 = vunpack.c.l.b16 %v1194
        %v1243 = vunpack.c.l.b16 %v1195
        %v1244 = vunpack.c.l.b16 %v1196
        %v1245 = vunpack.c.l.b16 %v1197
        %v1246 = vunpack.c.l.b16 %v1198
        %v1247 = vunpack.c.l.b16 %v1199
        %v1248 = vunpack.c.l.b16 %v1200
        %v1249 = vunpack.c.l.b16 %v1201
        %v1250 = vunpack.c.l.b16 %v1202
        %v1251 = vunpack.c.l.b16 %v1203
        %v1252 = vunpack.c.l.b16 %v1204
        %v1253 = vunpack.c.l.b16 %v1205
        %v1254 = vunpack.c.l.b16 %v1206
        %v1255 = vunpack.c.l.b16 %v1207
        %v1256 = vunpack.c.l.b16 %v1208
        %v1257 = vpack.c.b16 %v1234, %v1233
        %v1258 = vpack.c.b16 %v1236, %v1235
        %v1259 = vpack.c.b16 %v1238, %v1237
        %v1260 = vpack.c.b16 %v1240, %v1239
        %v1261 = vpack.c.b16 %v1242, %v1241
        %v1262 = vpack.c.b16 %v1244, %v1243
        %v1263 = vpack.c.b16 %v1246, %v1245
        %v1264 = vpack.c.b16 %v1248, %v1247
        %v1265 = vpack.c.b16 %v1250, %v1249
        %v1266 = vpack.c.b16 %v1252, %v1251
        %v1267 = vpack.c.b16 %v1254, %v1253
        %v1268 = vpack.c.b16 %v1256, %v1255
        %v1282 = vsel %vm1027, %v1129, 0
        %v1285 = vsel %vm1027, %v1131, 0
        %v1288 = vsel %vm1027, %v1133, 0
        %v1291 = vsel %vm1027, %v1135, 0
        %v1294 = vsel %vm1027, %v1137, 0
        %v1297 = vsel %vm1027, %v1139, 0
        %v1300 = vsel %vm1027, %v1141, 0
        %v1303 = vsel %vm1027, %v1143, 0
        %v1306 = vsel %vm1027, %v1145, 0
        %v1309 = vsel %vm1027, %v1147, 0
        %v1312 = vsel %vm1027, %v1149, 0
        %v1315 = vsel %vm1027, %v1151, 0
        %v1318 = vsel %vm1027, %v1153, 0
        %v1321 = vsel %vm1027, %v1155, 0
        %v1324 = vsel %vm1027, %v1157, 0
        %v1327 = vsel %vm1027, %v1183, 0
        %1329 = vmatprep.subr.bf16.mxu0 0
        %1330 = vmatpush1.bf16.msra.mxu0 %v1257
        %1331 = vmatprep.subr.bf16.mxu0 0
        %1332 = vmatpush1.bf16.msra.mxu0 %v1258
        %1333 = vmatprep.subr.bf16.mxu0 0
        %1334 = vmatpush1.bf16.msra.mxu0 %v1259
        %1335 = vmatprep.subr.bf16.mxu0 0
        %1336 = vmatpush1.bf16.msra.mxu0 %v1260
        %1337 = vmatprep.subr.bf16.mxu0 0
        %1338 = vmatpush1.bf16.msra.mxu0 %v1261
        %1339 = vmatprep.subr.bf16.mxu0 0
        %1340 = vmatpush1.bf16.msra.mxu0 %v1262
        %1341 = vmatprep.subr.bf16.mxu0 0
        %1342 = vmatpush1.bf16.msra.mxu0 %v1263
        %1343 = vmatprep.subr.bf16.mxu0 0
        %1344 = vmatpush1.bf16.msra.mxu0 %v1264
        %1345 = vmatprep.subr.bf16.mxu0 0
        %1346 = vmatpush1.bf16.msra.mxu0 %v1265
        %1347 = vmatprep.subr.bf16.mxu0 0
        %1348 = vmatpush1.bf16.msra.mxu0 %v1266
        %1349 = vmatprep.subr.bf16.mxu0 0
        %1350 = vmatpush1.bf16.msra.mxu0 %v1267
        %1351 = vmatprep.subr.bf16.mxu0 0
        %1352 = vmatpush1.bf16.msra.mxu0 %v1268
        %1353 = vmatprep.subr.bf16.mxu0 0
        %1354 = vmatpush1.bf16.msra.mxu0 0
        %1355 = vmatprep.subr.bf16.mxu0 0
        %1356 = vmatpush1.bf16.msra.mxu0 0
        %1357 = vmatprep.subr.bf16.mxu0 0
        %1358 = vmatpush1.bf16.msra.mxu0 0
        %1359 = vmatprep.subr.bf16.mxu0 0
        %1360 = vmatpush1.bf16.msra.mxu0 0
        %1361 = vmatprep.mubr.bf16.mxu0 %v1282
        %1362 = vmatmul.mubr.bf16.gmra.mrb[0].mxu0 %v1128
        %v1363 = vpop.f32.mrb[0].mxu0
        %v1364 = vadd.f32 0.0, %v1363
        %v1365 = vpop.f32.mrb[0].mxu0
        %v1366 = vpop.f32.mrb[0].mxu0
        %v1367 = vadd.f32 0.0, %v1366
        %v1368 = vpop.f32.mrb[0].mxu0
        %1369 = vmatprep.mubr.bf16.mxu0 %v1285
        %1370 = vmatmul.mubr.bf16.gmra.mrb[0].mxu0 %v1130
        %v1371 = vpop.f32.mrb[0].mxu0
        %v1372 = vadd.f32 0.0, %v1371
        %v1373 = vpop.f32.mrb[0].mxu0
        %v1374 = vpop.f32.mrb[0].mxu0
        %v1375 = vadd.f32 0.0, %v1374
        %v1376 = vpop.f32.mrb[0].mxu0
        %1377 = vmatprep.mubr.bf16.mxu0 %v1288
        %1378 = vmatmul.mubr.bf16.gmra.mrb[0].mxu0 %v1132
        %v1379 = vpop.f32.mrb[0].mxu0
        %v1380 = vadd.f32 0.0, %v1379
        %v1381 = vpop.f32.mrb[0].mxu0
        %v1382 = vpop.f32.mrb[0].mxu0
        %v1383 = vadd.f32 0.0, %v1382
        %v1384 = vpop.f32.mrb[0].mxu0
        %1385 = vmatprep.mubr.bf16.mxu0 %v1291
        %1386 = vmatmul.mubr.bf16.gmra.mrb[0].mxu0 %v1134
        %v1387 = vpop.f32.mrb[0].mxu0
        %v1388 = vadd.f32 0.0, %v1387
        %v1389 = vpop.f32.mrb[0].mxu0
        %v1390 = vpop.f32.mrb[0].mxu0
        %v1391 = vadd.f32 0.0, %v1390
        %v1392 = vpop.f32.mrb[0].mxu0
        %1393 = vmatprep.mubr.bf16.mxu0 %v1294
        %1394 = vmatmul.mubr.bf16.gmra.mrb[0].mxu0 %v1136
        %v1395 = vpop.f32.mrb[0].mxu0
        %v1396 = vadd.f32 0.0, %v1395
        %v1397 = vpop.f32.mrb[0].mxu0
        %v1398 = vpop.f32.mrb[0].mxu0
        %v1399 = vadd.f32 0.0, %v1398
        %v1400 = vpop.f32.mrb[0].mxu0
        %1401 = vmatprep.mubr.bf16.mxu0 %v1297
        %1402 = vmatmul.mubr.bf16.gmra.mrb[0].mxu0 %v1138
        %v1403 = vpop.f32.mrb[0].mxu0
        %v1404 = vadd.f32 0.0, %v1403
        %v1405 = vpop.f32.mrb[0].mxu0
        %v1406 = vpop.f32.mrb[0].mxu0
        %v1407 = vadd.f32 0.0, %v1406
        %v1408 = vpop.f32.mrb[0].mxu0
        %1409 = vmatprep.mubr.bf16.mxu0 %v1300
        %1410 = vmatmul.mubr.bf16.gmra.mrb[0].mxu0 %v1140
        %v1411 = vpop.f32.mrb[0].mxu0
        %v1412 = vadd.f32 0.0, %v1411
        %v1413 = vpop.f32.mrb[0].mxu0
        %v1414 = vpop.f32.mrb[0].mxu0
        %v1415 = vadd.f32 0.0, %v1414
        %v1416 = vpop.f32.mrb[0].mxu0
        %1417 = vmatprep.mubr.bf16.mxu0 %v1303
        %1418 = vmatmul.mubr.bf16.gmra.mrb[0].mxu0 %v1142
        %v1419 = vpop.f32.mrb[0].mxu0
        %v1420 = vadd.f32 0.0, %v1419
        %v1421 = vpop.f32.mrb[0].mxu0
        %v1422 = vpop.f32.mrb[0].mxu0
        %v1423 = vadd.f32 0.0, %v1422
        %v1424 = vpop.f32.mrb[0].mxu0
        %1425 = vmatprep.mubr.bf16.mxu0 %v1306
        %1426 = vmatmul.mubr.bf16.gmra.mrb[0].mxu0 %v1144
        %v1427 = vpop.f32.mrb[0].mxu0
        %v1428 = vadd.f32 0.0, %v1427
        %v1429 = vpop.f32.mrb[0].mxu0
        %v1430 = vpop.f32.mrb[0].mxu0
        %v1431 = vadd.f32 0.0, %v1430
        %v1432 = vpop.f32.mrb[0].mxu0
        %1433 = vmatprep.mubr.bf16.mxu0 %v1309
        %1434 = vmatmul.mubr.bf16.gmra.mrb[0].mxu0 %v1146
        %v1435 = vpop.f32.mrb[0].mxu0
        %v1436 = vadd.f32 0.0, %v1435
        %v1437 = vpop.f32.mrb[0].mxu0
        %v1438 = vpop.f32.mrb[0].mxu0
        %v1439 = vadd.f32 0.0, %v1438
        %v1440 = vpop.f32.mrb[0].mxu0
        %1441 = vmatprep.mubr.bf16.mxu0 %v1312
        %1442 = vmatmul.mubr.bf16.gmra.mrb[0].mxu0 %v1148
        %v1443 = vpop.f32.mrb[0].mxu0
        %v1444 = vadd.f32 0.0, %v1443
        %v1445 = vpop.f32.mrb[0].mxu0
        %v1446 = vpop.f32.mrb[0].mxu0
        %v1447 = vadd.f32 0.0, %v1446
        %v1448 = vpop.f32.mrb[0].mxu0
        %1449 = vmatprep.mubr.bf16.mxu0 %v1315
        %1450 = vmatmul.mubr.bf16.gmra.mrb[0].mxu0 %v1150
        %v1451 = vpop.f32.mrb[0].mxu0
        %v1452 = vadd.f32 0.0, %v1451
        %v1453 = vpop.f32.mrb[0].mxu0
        %v1454 = vpop.f32.mrb[0].mxu0
        %v1455 = vadd.f32 0.0, %v1454
        %v1456 = vpop.f32.mrb[0].mxu0
        %1457 = vmatprep.mubr.bf16.mxu0 %v1318
        %1458 = vmatmul.mubr.bf16.gmra.mrb[0].mxu0 %v1152
        %v1459 = vpop.f32.mrb[0].mxu0
        %v1460 = vadd.f32 0.0, %v1459
        %v1461 = vpop.f32.mrb[0].mxu0
        %v1462 = vpop.f32.mrb[0].mxu0
        %v1463 = vadd.f32 0.0, %v1462
        %v1464 = vpop.f32.mrb[0].mxu0
        %1465 = vmatprep.mubr.bf16.mxu0 %v1321
        %1466 = vmatmul.mubr.bf16.gmra.mrb[0].mxu0 %v1154
        %v1467 = vpop.f32.mrb[0].mxu0
        %v1468 = vadd.f32 0.0, %v1467
        %v1469 = vpop.f32.mrb[0].mxu0
        %v1470 = vpop.f32.mrb[0].mxu0
        %v1471 = vadd.f32 0.0, %v1470
        %v1472 = vpop.f32.mrb[0].mxu0
        %1473 = vmatprep.mubr.bf16.mxu0 %v1324
        %1474 = vmatmul.mubr.bf16.gmra.mrb[0].mxu0 %v1156
        %v1475 = vpop.f32.mrb[0].mxu0
        %v1476 = vadd.f32 0.0, %v1475
        %v1477 = vpop.f32.mrb[0].mxu0
        %v1478 = vpop.f32.mrb[0].mxu0
        %v1479 = vadd.f32 0.0, %v1478
        %v1480 = vpop.f32.mrb[0].mxu0
        %1481 = vmatprep.mubr.bf16.mxu0 %v1327
        %1482 = vmatmul.mubr.bf16.gmra.mrb[0].mxu0 %v1182
        %v1483 = vpop.f32.mrb[0].mxu0
        %v1484 = vadd.f32 0.0, %v1483
        %v1485 = vpop.f32.mrb[0].mxu0
        %v1486 = vpop.f32.mrb[0].mxu0
        %v1487 = vadd.f32 0.0, %v1486
        %v1488 = vpop.f32.mrb[0].mxu0
        %1489 = vdwg.mxu0
        %v1514 = vunpack.c.l.b16 %v1158
        %v1515 = vunpack.c.l.b16 %v1159
        %v1516 = vunpack.c.l.b16 %v1160
        %v1517 = vunpack.c.l.b16 %v1161
        %v1518 = vunpack.c.l.b16 %v1162
        %v1519 = vunpack.c.l.b16 %v1163
        %v1520 = vunpack.c.l.b16 %v1164
        %v1521 = vunpack.c.l.b16 %v1165
        %v1522 = vunpack.c.l.b16 %v1166
        %v1523 = vunpack.c.l.b16 %v1167
        %v1524 = vunpack.c.l.b16 %v1168
        %v1525 = vunpack.c.l.b16 %v1169
        %v1526 = vunpack.c.l.b16 %v1170
        %v1527 = vunpack.c.l.b16 %v1171
        %v1528 = vunpack.c.l.b16 %v1172
        %v1529 = vunpack.c.l.b16 %v1173
        %v1530 = vunpack.c.l.b16 %v1174
        %v1531 = vunpack.c.l.b16 %v1175
        %v1532 = vunpack.c.l.b16 %v1176
        %v1533 = vunpack.c.l.b16 %v1177
        %v1534 = vunpack.c.l.b16 %v1178
        %v1535 = vunpack.c.l.b16 %v1179
        %v1536 = vunpack.c.l.b16 %v1180
        %v1537 = vunpack.c.l.b16 %v1181
        %v1538 = vpack.c.b16 %v1515, %v1514
        %v1539 = vpack.c.b16 %v1517, %v1516
        %v1540 = vpack.c.b16 %v1519, %v1518
        %v1541 = vpack.c.b16 %v1521, %v1520
        %v1542 = vpack.c.b16 %v1523, %v1522
        %v1543 = vpack.c.b16 %v1525, %v1524
        %v1544 = vpack.c.b16 %v1527, %v1526
        %v1545 = vpack.c.b16 %v1529, %v1528
        %v1546 = vpack.c.b16 %v1531, %v1530
        %v1547 = vpack.c.b16 %v1533, %v1532
        %v1548 = vpack.c.b16 %v1535, %v1534
        %v1549 = vpack.c.b16 %v1537, %v1536
        %v1563 = vsel %vm1027, %v1127, 0
        %1565 = vmatprep.subr.bf16.mxu0 0
        %1566 = vmatpush1.bf16.msra.mxu0 %v1538
        %1567 = vmatprep.subr.bf16.mxu0 0
        %1568 = vmatpush1.bf16.msra.mxu0 %v1539
        %1569 = vmatprep.subr.bf16.mxu0 0
        %1570 = vmatpush1.bf16.msra.mxu0 %v1540
        %1571 = vmatprep.subr.bf16.mxu0 0
        %1572 = vmatpush1.bf16.msra.mxu0 %v1541
        %1573 = vmatprep.subr.bf16.mxu0 0
        %1574 = vmatpush1.bf16.msra.mxu0 %v1542
        %1575 = vmatprep.subr.bf16.mxu0 0
        %1576 = vmatpush1.bf16.msra.mxu0 %v1543
        %1577 = vmatprep.subr.bf16.mxu0 0
        %1578 = vmatpush1.bf16.msra.mxu0 %v1544
        %1579 = vmatprep.subr.bf16.mxu0 0
        %1580 = vmatpush1.bf16.msra.mxu0 %v1545
        %1581 = vmatprep.subr.bf16.mxu0 0
        %1582 = vmatpush1.bf16.msra.mxu0 %v1546
        %1583 = vmatprep.subr.bf16.mxu0 0
        %1584 = vmatpush1.bf16.msra.mxu0 %v1547
        %1585 = vmatprep.subr.bf16.mxu0 0
        %1586 = vmatpush1.bf16.msra.mxu0 %v1548
        %1587 = vmatprep.subr.bf16.mxu0 0
        %1588 = vmatpush1.bf16.msra.mxu0 %v1549
        %1589 = vmatprep.subr.bf16.mxu0 0
        %1590 = vmatpush1.bf16.msra.mxu0 0
        %1591 = vmatprep.subr.bf16.mxu0 0
        %1592 = vmatpush1.bf16.msra.mxu0 0
        %1593 = vmatprep.subr.bf16.mxu0 0
        %1594 = vmatpush1.bf16.msra.mxu0 0
        %1595 = vmatprep.subr.bf16.mxu0 0
        %1596 = vmatpush1.bf16.msra.mxu0 0
        %1597 = vmatprep.mubr.bf16.mxu0 %v1563
        %1598 = vmatmul.mubr.bf16.gmra.mrb[0].mxu0 %v1126
        %v1599 = vpop.f32.mrb[0].mxu0
        %v1600 = vadd.f32 %v1364, %v1599
        %v1601 = vpop.f32.mrb[0].mxu0
        %v1602 = vpop.f32.mrb[0].mxu0
        %v1603 = vadd.f32 %v1367, %v1602
        %v1604 = vpop.f32.mrb[0].mxu0
        %1605 = vmatprep.mubr.bf16.mxu0 %v1282
        %1606 = vmatmul.mubr.bf16.gmra.mrb[0].mxu0 %v1128
        %v1607 = vpop.f32.mrb[0].mxu0
        %v1608 = vadd.f32 %v1372, %v1607
        %v1609 = vpop.f32.mrb[0].mxu0
        %v1610 = vpop.f32.mrb[0].mxu0
        %v1611 = vadd.f32 %v1375, %v1610
        %v1612 = vpop.f32.mrb[0].mxu0
        %1613 = vmatprep.mubr.bf16.mxu0 %v1285
        %1614 = vmatmul.mubr.bf16.gmra.mrb[0].mxu0 %v1130
        %v1615 = vpop.f32.mrb[0].mxu0
        %v1616 = vadd.f32 %v1380, %v1615
        %v1617 = vpop.f32.mrb[0].mxu0
        %v1618 = vpop.f32.mrb[0].mxu0
        %v1619 = vadd.f32 %v1383, %v1618
        %v1620 = vpop.f32.mrb[0].mxu0
        %1621 = vmatprep.mubr.bf16.mxu0 %v1288
        %1622 = vmatmul.mubr.bf16.gmra.mrb[0].mxu0 %v1132
        %v1623 = vpop.f32.mrb[0].mxu0
        %v1624 = vadd.f32 %v1388, %v1623
        %v1625 = vpop.f32.mrb[0].mxu0
        %v1626 = vpop.f32.mrb[0].mxu0
        %v1627 = vadd.f32 %v1391, %v1626
        %v1628 = vpop.f32.mrb[0].mxu0
        %1629 = vmatprep.mubr.bf16.mxu0 %v1291
        %1630 = vmatmul.mubr.bf16.gmra.mrb[0].mxu0 %v1134
        %v1631 = vpop.f32.mrb[0].mxu0
        %v1632 = vadd.f32 %v1396, %v1631
        %v1633 = vpop.f32.mrb[0].mxu0
        %v1634 = vpop.f32.mrb[0].mxu0
        %v1635 = vadd.f32 %v1399, %v1634
        %v1636 = vpop.f32.mrb[0].mxu0
        %1637 = vmatprep.mubr.bf16.mxu0 %v1294
        %1638 = vmatmul.mubr.bf16.gmra.mrb[0].mxu0 %v1136
        %v1639 = vpop.f32.mrb[0].mxu0
        %v1640 = vadd.f32 %v1404, %v1639
        %v1641 = vpop.f32.mrb[0].mxu0
        %v1642 = vpop.f32.mrb[0].mxu0
        %v1643 = vadd.f32 %v1407, %v1642
        %v1644 = vpop.f32.mrb[0].mxu0
        %1645 = vmatprep.mubr.bf16.mxu0 %v1297
        %1646 = vmatmul.mubr.bf16.gmra.mrb[0].mxu0 %v1138
        %v1647 = vpop.f32.mrb[0].mxu0
        %v1648 = vadd.f32 %v1412, %v1647
        %v1649 = vpop.f32.mrb[0].mxu0
        %v1650 = vpop.f32.mrb[0].mxu0
        %v1651 = vadd.f32 %v1415, %v1650
        %v1652 = vpop.f32.mrb[0].mxu0
        %1653 = vmatprep.mubr.bf16.mxu0 %v1300
        %1654 = vmatmul.mubr.bf16.gmra.mrb[0].mxu0 %v1140
        %v1655 = vpop.f32.mrb[0].mxu0
        %v1656 = vadd.f32 %v1420, %v1655
        %v1657 = vpop.f32.mrb[0].mxu0
        %v1658 = vpop.f32.mrb[0].mxu0
        %v1659 = vadd.f32 %v1423, %v1658
        %v1660 = vpop.f32.mrb[0].mxu0
        %1661 = vmatprep.mubr.bf16.mxu0 %v1303
        %1662 = vmatmul.mubr.bf16.gmra.mrb[0].mxu0 %v1142
        %v1663 = vpop.f32.mrb[0].mxu0
        %v1664 = vadd.f32 %v1428, %v1663
        %v1665 = vpop.f32.mrb[0].mxu0
        %v1666 = vpop.f32.mrb[0].mxu0
        %v1667 = vadd.f32 %v1431, %v1666
        %v1668 = vpop.f32.mrb[0].mxu0
        %1669 = vmatprep.mubr.bf16.mxu0 %v1306
        %1670 = vmatmul.mubr.bf16.gmra.mrb[0].mxu0 %v1144
        %v1671 = vpop.f32.mrb[0].mxu0
        %v1672 = vadd.f32 %v1436, %v1671
        %v1673 = vpop.f32.mrb[0].mxu0
        %v1674 = vpop.f32.mrb[0].mxu0
        %v1675 = vadd.f32 %v1439, %v1674
        %v1676 = vpop.f32.mrb[0].mxu0
        %1677 = vmatprep.mubr.bf16.mxu0 %v1309
        %1678 = vmatmul.mubr.bf16.gmra.mrb[0].mxu0 %v1146
        %v1679 = vpop.f32.mrb[0].mxu0
        %v1680 = vadd.f32 %v1444, %v1679
        %v1681 = vpop.f32.mrb[0].mxu0
        %v1682 = vpop.f32.mrb[0].mxu0
        %v1683 = vadd.f32 %v1447, %v1682
        %v1684 = vpop.f32.mrb[0].mxu0
        %1685 = vmatprep.mubr.bf16.mxu0 %v1312
        %1686 = vmatmul.mubr.bf16.gmra.mrb[0].mxu0 %v1148
        %v1687 = vpop.f32.mrb[0].mxu0
        %v1688 = vadd.f32 %v1452, %v1687
        %v1689 = vpop.f32.mrb[0].mxu0
        %v1690 = vpop.f32.mrb[0].mxu0
        %v1691 = vadd.f32 %v1455, %v1690
        %v1692 = vpop.f32.mrb[0].mxu0
        %1693 = vmatprep.mubr.bf16.mxu0 %v1315
        %1694 = vmatmul.mubr.bf16.gmra.mrb[0].mxu0 %v1150
        %v1695 = vpop.f32.mrb[0].mxu0
        %v1696 = vadd.f32 %v1460, %v1695
        %v1697 = vpop.f32.mrb[0].mxu0
        %v1698 = vpop.f32.mrb[0].mxu0
        %v1699 = vadd.f32 %v1463, %v1698
        %v1700 = vpop.f32.mrb[0].mxu0
        %1701 = vmatprep.mubr.bf16.mxu0 %v1318
        %1702 = vmatmul.mubr.bf16.gmra.mrb[0].mxu0 %v1152
        %v1703 = vpop.f32.mrb[0].mxu0
        %v1704 = vadd.f32 %v1468, %v1703
        %v1705 = vpop.f32.mrb[0].mxu0
        %v1706 = vpop.f32.mrb[0].mxu0
        %v1707 = vadd.f32 %v1471, %v1706
        %v1708 = vpop.f32.mrb[0].mxu0
        %1709 = vmatprep.mubr.bf16.mxu0 %v1321
        %1710 = vmatmul.mubr.bf16.gmra.mrb[0].mxu0 %v1154
        %v1711 = vpop.f32.mrb[0].mxu0
        %v1712 = vadd.f32 %v1476, %v1711
        %v1713 = vpop.f32.mrb[0].mxu0
        %v1714 = vpop.f32.mrb[0].mxu0
        %v1715 = vadd.f32 %v1479, %v1714
        %v1716 = vpop.f32.mrb[0].mxu0
        %1717 = vmatprep.mubr.bf16.mxu0 %v1324
        %1718 = vmatmul.mubr.bf16.gmra.mrb[0].mxu0 %v1156
        %v1719 = vpop.f32.mrb[0].mxu0
        %v1720 = vadd.f32 %v1484, %v1719
        %v1721 = vpop.f32.mrb[0].mxu0
        %v1722 = vpop.f32.mrb[0].mxu0
        %v1723 = vadd.f32 %v1487, %v1722
        %v1724 = vpop.f32.mrb[0].mxu0
        %1725 = vdwg.mxu0
        %v1726 = vld [vmem:[#allocation2 + $0x20] sm:$0xff]
        %v1727 = vld [vmem:[#allocation2 + $0x28] sm:$0xff]
        %v1728 = vld [vmem:[#allocation2 + $0x30] sm:$0xff]
        %v1729 = vld [vmem:[#allocation2 + $0x38] sm:$0xff]
        %v1730 = vld [vmem:[#allocation2 + $0x40] sm:$0xff]
        %v1731 = vld [vmem:[#allocation2 + $0x48] sm:$0xff]
        %v1732 = vld [vmem:[#allocation2 + $0x50] sm:$0xff]
        %v1733 = vld [vmem:[#allocation2 + $0x58] sm:$0xff]
        %v1734 = vld [vmem:[#allocation2 + $0x60] sm:$0xff]
        %v1735 = vld [vmem:[#allocation2 + $0x68] sm:$0xff]
        %v1736 = vld [vmem:[#allocation2 + $0x70] sm:$0xff]
        %v1737 = vld [vmem:[#allocation2 + $0x78] sm:$0xff]
        %v1738 = vld [vmem:[#allocation2 + $0x80] sm:$0xff]
        %v1739 = vld [vmem:[#allocation2 + $0x88] sm:$0xff]
        %v1740 = vld [vmem:[#allocation2 + $0x90] sm:$0xff]
        %v1741 = vld [vmem:[#allocation2 + $0x98] sm:$0xff]
        %v1742 = vld [vmem:[#allocation2 + $0xa0] sm:$0xff]
        %v1743 = vld [vmem:[#allocation2 + $0xa8] sm:$0xff]
        %v1744 = vld [vmem:[#allocation2 + $0xb0] sm:$0xff]
        %v1745 = vld [vmem:[#allocation2 + $0xb8] sm:$0xff]
        %v1746 = vld [vmem:[#allocation2 + $0xc0] sm:$0xff]
        %v1747 = vld [vmem:[#allocation2 + $0xc8] sm:$0xff]
        %v1748 = vld [vmem:[#allocation2 + $0xd0] sm:$0xff]
        %v1749 = vld [vmem:[#allocation2 + $0xd8] sm:$0xff]
        %v1750 = vld [vmem:[#allocation2 + $0xe0] sm:$0xff]
        %v1751 = vld [vmem:[#allocation2 + $0xe8] sm:$0xff]
        %v1752 = vld [vmem:[#allocation2 + $0xf0] sm:$0xff]
        %v1753 = vld [vmem:[#allocation2 + $0xf8] sm:$0xff]
        %v1754 = vld [vmem:[#allocation2 + $0x100] sm:$0xff]
        %v1755 = vld [vmem:[#allocation2 + $0x108] sm:$0xff]
        %v1756 = vld [vmem:[#allocation2 + $0x110] sm:$0xff]
        %v1757 = vld [vmem:[#allocation2 + $0x118] sm:$0xff]
        %s1758 = scalar_lea.vmem [#allocation8], 192
        %v1759 = vld [vmem:[%s1758] sm:$0xf]
        %v1760 = vld [vmem:[%s1758 + $0x4] sm:$0xf]
        %v1761 = vld [vmem:[%s1758 + $0x8] sm:$0xf]
        %v1762 = vld [vmem:[%s1758 + $0xc] sm:$0xf]
        %v1763 = vld [vmem:[%s1758 + $0x10] sm:$0xf]
        %v1764 = vld [vmem:[%s1758 + $0x14] sm:$0xf]
        %v1765 = vld [vmem:[%s1758 + $0x18] sm:$0xf]
        %v1766 = vld [vmem:[%s1758 + $0x1c] sm:$0xf]
        %v1767 = vld [vmem:[%s1758 + $0x20] sm:$0xf]
        %v1768 = vld [vmem:[%s1758 + $0x24] sm:$0xf]
        %v1769 = vld [vmem:[%s1758 + $0x28] sm:$0xf]
        %v1770 = vld [vmem:[%s1758 + $0x2c] sm:$0xf]
        %v1771 = vld [vmem:[%s1758 + $0x30] sm:$0xf]
        %v1772 = vld [vmem:[%s1758 + $0x34] sm:$0xf]
        %v1773 = vld [vmem:[%s1758 + $0x38] sm:$0xf]
        %v1774 = vld [vmem:[%s1758 + $0x3c] sm:$0xf]
        %v1775 = vld [vmem:[%s1758 + $0x40] sm:$0xf]
        %v1776 = vld [vmem:[%s1758 + $0x44] sm:$0xf]
        %v1777 = vld [vmem:[%s1758 + $0x48] sm:$0xf]
        %v1778 = vld [vmem:[%s1758 + $0x4c] sm:$0xf]
        %v1779 = vld [vmem:[%s1758 + $0x50] sm:$0xf]
        %v1780 = vld [vmem:[%s1758 + $0x54] sm:$0xf]
        %v1781 = vld [vmem:[%s1758 + $0x58] sm:$0xf]
        %v1782 = vld [vmem:[%s1758 + $0x5c] sm:$0xf]
        %v1807 = vunpack.c.l.b16 %v1759
        %v1808 = vunpack.c.l.b16 %v1760
        %v1809 = vunpack.c.l.b16 %v1761
        %v1810 = vunpack.c.l.b16 %v1762
        %v1811 = vunpack.c.l.b16 %v1763
        %v1812 = vunpack.c.l.b16 %v1764
        %v1813 = vunpack.c.l.b16 %v1765
        %v1814 = vunpack.c.l.b16 %v1766
        %v1815 = vunpack.c.l.b16 %v1767
        %v1816 = vunpack.c.l.b16 %v1768
        %v1817 = vunpack.c.l.b16 %v1769
        %v1818 = vunpack.c.l.b16 %v1770
        %v1819 = vunpack.c.l.b16 %v1771
        %v1820 = vunpack.c.l.b16 %v1772
        %v1821 = vunpack.c.l.b16 %v1773
        %v1822 = vunpack.c.l.b16 %v1774
        %v1823 = vunpack.c.l.b16 %v1775
        %v1824 = vunpack.c.l.b16 %v1776
        %v1825 = vunpack.c.l.b16 %v1777
        %v1826 = vunpack.c.l.b16 %v1778
        %v1827 = vunpack.c.l.b16 %v1779
        %v1828 = vunpack.c.l.b16 %v1780
        %v1829 = vunpack.c.l.b16 %v1781
        %v1830 = vunpack.c.l.b16 %v1782
        %v1831 = vpack.c.b16 %v1808, %v1807
        %v1832 = vpack.c.b16 %v1810, %v1809
        %v1833 = vpack.c.b16 %v1812, %v1811
        %v1834 = vpack.c.b16 %v1814, %v1813
        %v1835 = vpack.c.b16 %v1816, %v1815
        %v1836 = vpack.c.b16 %v1818, %v1817
        %v1837 = vpack.c.b16 %v1820, %v1819
        %v1838 = vpack.c.b16 %v1822, %v1821
        %v1839 = vpack.c.b16 %v1824, %v1823
        %v1840 = vpack.c.b16 %v1826, %v1825
        %v1841 = vpack.c.b16 %v1828, %v1827
        %v1842 = vpack.c.b16 %v1830, %v1829
        %v1856 = vsel %vm1027, %v1727, 0
        %v1859 = vsel %vm1027, %v1729, 0
        %v1862 = vsel %vm1027, %v1731, 0
        %v1865 = vsel %vm1027, %v1733, 0
        %v1868 = vsel %vm1027, %v1735, 0
        %v1871 = vsel %vm1027, %v1737, 0
        %v1874 = vsel %vm1027, %v1739, 0
        %v1877 = vsel %vm1027, %v1741, 0
        %v1880 = vsel %vm1027, %v1743, 0
        %v1883 = vsel %vm1027, %v1745, 0
        %v1886 = vsel %vm1027, %v1747, 0
        %v1889 = vsel %vm1027, %v1749, 0
        %v1892 = vsel %vm1027, %v1751, 0
        %v1895 = vsel %vm1027, %v1753, 0
        %v1898 = vsel %vm1027, %v1755, 0
        %v1901 = vsel %vm1027, %v1757, 0
        %1903 = vmatprep.subr.bf16.mxu0 0
        %1904 = vmatpush1.bf16.msra.mxu0 %v1831
        %1905 = vmatprep.subr.bf16.mxu0 0
        %1906 = vmatpush1.bf16.msra.mxu0 %v1832
        %1907 = vmatprep.subr.bf16.mxu0 0
        %1908 = vmatpush1.bf16.msra.mxu0 %v1833
        %1909 = vmatprep.subr.bf16.mxu0 0
        %1910 = vmatpush1.bf16.msra.mxu0 %v1834
        %1911 = vmatprep.subr.bf16.mxu0 0
        %1912 = vmatpush1.bf16.msra.mxu0 %v1835
        %1913 = vmatprep.subr.bf16.mxu0 0
        %1914 = vmatpush1.bf16.msra.mxu0 %v1836
        %1915 = vmatprep.subr.bf16.mxu0 0
        %1916 = vmatpush1.bf16.msra.mxu0 %v1837
        %1917 = vmatprep.subr.bf16.mxu0 0
        %1918 = vmatpush1.bf16.msra.mxu0 %v1838
        %1919 = vmatprep.subr.bf16.mxu0 0
        %1920 = vmatpush1.bf16.msra.mxu0 %v1839
        %1921 = vmatprep.subr.bf16.mxu0 0
        %1922 = vmatpush1.bf16.msra.mxu0 %v1840
        %1923 = vmatprep.subr.bf16.mxu0 0
        %1924 = vmatpush1.bf16.msra.mxu0 %v1841
        %1925 = vmatprep.subr.bf16.mxu0 0
        %1926 = vmatpush1.bf16.msra.mxu0 %v1842
        %1927 = vmatprep.subr.bf16.mxu0 0
        %1928 = vmatpush1.bf16.msra.mxu0 0
        %1929 = vmatprep.subr.bf16.mxu0 0
        %1930 = vmatpush1.bf16.msra.mxu0 0
        %1931 = vmatprep.subr.bf16.mxu0 0
        %1932 = vmatpush1.bf16.msra.mxu0 0
        %1933 = vmatprep.subr.bf16.mxu0 0
        %1934 = vmatpush1.bf16.msra.mxu0 0
        %1935 = vmatprep.mubr.bf16.mxu0 %v1856
        %1936 = vmatmul.mubr.bf16.gmra.mrb[0].mxu0 %v1726
        %v1937 = vpop.f32.mrb[0].mxu0
        %v1938 = vadd.f32 0.0, %v1937
        %v1939 = vpop.f32.mrb[0].mxu0
        %v1940 = vpop.f32.mrb[0].mxu0
        %v1941 = vadd.f32 0.0, %v1940
        %v1942 = vpop.f32.mrb[0].mxu0
        %1943 = vmatprep.mubr.bf16.mxu0 %v1859
        %1944 = vmatmul.mubr.bf16.gmra.mrb[0].mxu0 %v1728
        %v1945 = vpop.f32.mrb[0].mxu0
        %v1946 = vadd.f32 0.0, %v1945
        %v1947 = vpop.f32.mrb[0].mxu0
        %v1948 = vpop.f32.mrb[0].mxu0
        %v1949 = vadd.f32 0.0, %v1948
        %v1950 = vpop.f32.mrb[0].mxu0
        %1951 = vmatprep.mubr.bf16.mxu0 %v1862
        %1952 = vmatmul.mubr.bf16.gmra.mrb[0].mxu0 %v1730
        %v1953 = vpop.f32.mrb[0].mxu0
        %v1954 = vadd.f32 0.0, %v1953
        %v1955 = vpop.f32.mrb[0].mxu0
        %v1956 = vpop.f32.mrb[0].mxu0
        %v1957 = vadd.f32 0.0, %v1956
        %v1958 = vpop.f32.mrb[0].mxu0
        %1959 = vmatprep.mubr.bf16.mxu0 %v1865
        %1960 = vmatmul.mubr.bf16.gmra.mrb[0].mxu0 %v1732
        %v1961 = vpop.f32.mrb[0].mxu0
        %v1962 = vadd.f32 0.0, %v1961
        %v1963 = vpop.f32.mrb[0].mxu0
        %v1964 = vpop.f32.mrb[0].mxu0
        %v1965 = vadd.f32 0.0, %v1964
        %v1966 = vpop.f32.mrb[0].mxu0
        %1967 = vmatprep.mubr.bf16.mxu0 %v1868
        %1968 = vmatmul.mubr.bf16.gmra.mrb[0].mxu0 %v1734
        %v1969 = vpop.f32.mrb[0].mxu0
        %v1970 = vadd.f32 0.0, %v1969
        %v1971 = vpop.f32.mrb[0].mxu0
        %v1972 = vpop.f32.mrb[0].mxu0
        %v1973 = vadd.f32 0.0, %v1972
        %v1974 = vpop.f32.mrb[0].mxu0
        %1975 = vmatprep.mubr.bf16.mxu0 %v1871
        %1976 = vmatmul.mubr.bf16.gmra.mrb[0].mxu0 %v1736
        %v1977 = vpop.f32.mrb[0].mxu0
        %v1978 = vadd.f32 0.0, %v1977
        %v1979 = vpop.f32.mrb[0].mxu0
        %v1980 = vpop.f32.mrb[0].mxu0
        %v1981 = vadd.f32 0.0, %v1980
        %v1982 = vpop.f32.mrb[0].mxu0
        %1983 = vmatprep.mubr.bf16.mxu0 %v1874
        %1984 = vmatmul.mubr.bf16.gmra.mrb[0].mxu0 %v1738
        %v1985 = vpop.f32.mrb[0].mxu0
        %v1986 = vadd.f32 0.0, %v1985
        %v1987 = vpop.f32.mrb[0].mxu0
        %v1988 = vpop.f32.mrb[0].mxu0
        %v1989 = vadd.f32 0.0, %v1988
        %v1990 = vpop.f32.mrb[0].mxu0
        %1991 = vmatprep.mubr.bf16.mxu0 %v1877
        %1992 = vmatmul.mubr.bf16.gmra.mrb[0].mxu0 %v1740
        %v1993 = vpop.f32.mrb[0].mxu0
        %v1994 = vadd.f32 0.0, %v1993
        %v1995 = vpop.f32.mrb[0].mxu0
        %v1996 = vpop.f32.mrb[0].mxu0
        %v1997 = vadd.f32 0.0, %v1996
        %v1998 = vpop.f32.mrb[0].mxu0
        %1999 = vmatprep.mubr.bf16.mxu0 %v1880
        %2000 = vmatmul.mubr.bf16.gmra.mrb[0].mxu0 %v1742
        %v2001 = vpop.f32.mrb[0].mxu0
        %v2002 = vadd.f32 0.0, %v2001
        %v2003 = vpop.f32.mrb[0].mxu0
        %v2004 = vpop.f32.mrb[0].mxu0
        %v2005 = vadd.f32 0.0, %v2004
        %v2006 = vpop.f32.mrb[0].mxu0
        %2007 = vmatprep.mubr.bf16.mxu0 %v1883
        %2008 = vmatmul.mubr.bf16.gmra.mrb[0].mxu0 %v1744
        %v2009 = vpop.f32.mrb[0].mxu0
        %v2010 = vadd.f32 0.0, %v2009
        %v2011 = vpop.f32.mrb[0].mxu0
        %v2012 = vpop.f32.mrb[0].mxu0
        %v2013 = vadd.f32 0.0, %v2012
        %v2014 = vpop.f32.mrb[0].mxu0
        %2015 = vmatprep.mubr.bf16.mxu0 %v1886
        %2016 = vmatmul.mubr.bf16.gmra.mrb[0].mxu0 %v1746
        %v2017 = vpop.f32.mrb[0].mxu0
        %v2018 = vadd.f32 0.0, %v2017
        %v2019 = vpop.f32.mrb[0].mxu0
        %v2020 = vpop.f32.mrb[0].mxu0
        %v2021 = vadd.f32 0.0, %v2020
        %v2022 = vpop.f32.mrb[0].mxu0
        %2023 = vmatprep.mubr.bf16.mxu0 %v1889
        %2024 = vmatmul.mubr.bf16.gmra.mrb[0].mxu0 %v1748
        %v2025 = vpop.f32.mrb[0].mxu0
        %v2026 = vadd.f32 0.0, %v2025
        %v2027 = vpop.f32.mrb[0].mxu0
        %v2028 = vpop.f32.mrb[0].mxu0
        %v2029 = vadd.f32 0.0, %v2028
        %v2030 = vpop.f32.mrb[0].mxu0
        %2031 = vmatprep.mubr.bf16.mxu0 %v1892
        %2032 = vmatmul.mubr.bf16.gmra.mrb[0].mxu0 %v1750
        %v2033 = vpop.f32.mrb[0].mxu0
        %v2034 = vadd.f32 0.0, %v2033
        %v2035 = vpop.f32.mrb[0].mxu0
        %v2036 = vpop.f32.mrb[0].mxu0
        %v2037 = vadd.f32 0.0, %v2036
        %v2038 = vpop.f32.mrb[0].mxu0
        %2039 = vmatprep.mubr.bf16.mxu0 %v1895
        %2040 = vmatmul.mubr.bf16.gmra.mrb[0].mxu0 %v1752
        %v2041 = vpop.f32.mrb[0].mxu0
        %v2042 = vadd.f32 0.0, %v2041
        %v2043 = vpop.f32.mrb[0].mxu0
        %v2044 = vpop.f32.mrb[0].mxu0
        %v2045 = vadd.f32 0.0, %v2044
        %v2046 = vpop.f32.mrb[0].mxu0
        %2047 = vmatprep.mubr.bf16.mxu0 %v1898
        %2048 = vmatmul.mubr.bf16.gmra.mrb[0].mxu0 %v1754
        %v2049 = vpop.f32.mrb[0].mxu0
        %v2050 = vadd.f32 0.0, %v2049
        %v2051 = vpop.f32.mrb[0].mxu0
        %v2052 = vpop.f32.mrb[0].mxu0
        %v2053 = vadd.f32 0.0, %v2052
        %v2054 = vpop.f32.mrb[0].mxu0
        %2055 = vmatprep.mubr.bf16.mxu0 %v1901
        %2056 = vmatmul.mubr.bf16.gmra.mrb[0].mxu0 %v1756
        %v2057 = vpop.f32.mrb[0].mxu0
        %v2058 = vadd.f32 0.0, %v2057
        %v2059 = vpop.f32.mrb[0].mxu0
        %v2060 = vpop.f32.mrb[0].mxu0
        %v2061 = vadd.f32 0.0, %v2060
        %v2062 = vpop.f32.mrb[0].mxu0
        %2063 = vdwg.mxu0
        %v2064 = vadd.f32 %v1600, %v1938
        %v2065 = vadd.f32 %v1603, %v1941
        %v2066 = vadd.f32 %v1608, %v1946
        %v2067 = vadd.f32 %v1611, %v1949
        %v2068 = vadd.f32 %v1616, %v1954
        %v2069 = vadd.f32 %v1619, %v1957
        %v2070 = vadd.f32 %v1624, %v1962
        %v2071 = vadd.f32 %v1627, %v1965
        %v2072 = vadd.f32 %v1632, %v1970
        %v2073 = vadd.f32 %v1635, %v1973
        %v2074 = vadd.f32 %v1640, %v1978
        %v2075 = vadd.f32 %v1643, %v1981
        %v2076 = vadd.f32 %v1648, %v1986
        %v2077 = vadd.f32 %v1651, %v1989
        %v2078 = vadd.f32 %v1656, %v1994
        %v2079 = vadd.f32 %v1659, %v1997
        %v2080 = vadd.f32 %v1664, %v2002
        %v2081 = vadd.f32 %v1667, %v2005
        %v2082 = vadd.f32 %v1672, %v2010
        %v2083 = vadd.f32 %v1675, %v2013
        %v2084 = vadd.f32 %v1680, %v2018
        %v2085 = vadd.f32 %v1683, %v2021
        %v2086 = vadd.f32 %v1688, %v2026
        %v2087 = vadd.f32 %v1691, %v2029
        %v2088 = vadd.f32 %v1696, %v2034
        %v2089 = vadd.f32 %v1699, %v2037
        %v2090 = vadd.f32 %v1704, %v2042
        %v2091 = vadd.f32 %v1707, %v2045
        %v2092 = vadd.f32 %v1712, %v2050
        %v2093 = vadd.f32 %v1715, %v2053
        %v2094 = vadd.f32 %v1720, %v2058
        %v2095 = vadd.f32 %v1723, %v2061
        %v2096 = vld [vmem:[%s4] sm:$0x1]
        %v2098 = vlaneseq
        %v2099 = vshrl.u32 %v2098, 7
        %v2100 = vsub.s32 0, %v2099
        %v2101 = vrot.slane %v2096, %v2100
        %v2103 = vadd.f32 %v2064, %v2101
        %v2104 = vadd.f32 %v2065, %v2101
        %v2105 = vadd.f32 %v2066, %v2101
        %v2106 = vadd.f32 %v2067, %v2101
        %v2107 = vadd.f32 %v2068, %v2101
        %v2108 = vadd.f32 %v2069, %v2101
        %v2109 = vadd.f32 %v2070, %v2101
        %v2110 = vadd.f32 %v2071, %v2101
        %v2111 = vadd.f32 %v2072, %v2101
        %v2112 = vadd.f32 %v2073, %v2101
        %v2113 = vadd.f32 %v2074, %v2101
        %v2114 = vadd.f32 %v2075, %v2101
        %v2115 = vadd.f32 %v2076, %v2101
        %v2116 = vadd.f32 %v2077, %v2101
        %v2117 = vadd.f32 %v2078, %v2101
        %v2118 = vadd.f32 %v2079, %v2101
        %v2119 = vadd.f32 %v2080, %v2101
        %v2120 = vadd.f32 %v2081, %v2101
        %v2121 = vadd.f32 %v2082, %v2101
        %v2122 = vadd.f32 %v2083, %v2101
        %v2123 = vadd.f32 %v2084, %v2101
        %v2124 = vadd.f32 %v2085, %v2101
        %v2125 = vadd.f32 %v2086, %v2101
        %v2126 = vadd.f32 %v2087, %v2101
        %v2127 = vadd.f32 %v2088, %v2101
        %v2128 = vadd.f32 %v2089, %v2101
        %v2129 = vadd.f32 %v2090, %v2101
        %v2130 = vadd.f32 %v2091, %v2101
        %v2131 = vadd.f32 %v2092, %v2101
        %v2132 = vadd.f32 %v2093, %v2101
        %v2133 = vadd.f32 %v2094, %v2101
        %v2134 = vadd.f32 %v2095, %v2101
        %v2135 = vmax.f32 %v2103, 0.0
        %v2136 = vmax.f32 %v2104, 0.0
        %v2137 = vmax.f32 %v2105, 0.0
        %v2138 = vmax.f32 %v2106, 0.0
        %v2139 = vmax.f32 %v2107, 0.0
        %v2140 = vmax.f32 %v2108, 0.0
        %v2141 = vmax.f32 %v2109, 0.0
        %v2142 = vmax.f32 %v2110, 0.0
        %v2143 = vmax.f32 %v2111, 0.0
        %v2144 = vmax.f32 %v2112, 0.0
        %v2145 = vmax.f32 %v2113, 0.0
        %v2146 = vmax.f32 %v2114, 0.0
        %v2147 = vmax.f32 %v2115, 0.0
        %v2148 = vmax.f32 %v2116, 0.0
        %v2149 = vmax.f32 %v2117, 0.0
        %v2150 = vmax.f32 %v2118, 0.0
        %v2151 = vmax.f32 %v2119, 0.0
        %v2152 = vmax.f32 %v2120, 0.0
        %v2153 = vmax.f32 %v2121, 0.0
        %v2154 = vmax.f32 %v2122, 0.0
        %v2155 = vmax.f32 %v2123, 0.0
        %v2156 = vmax.f32 %v2124, 0.0
        %v2157 = vmax.f32 %v2125, 0.0
        %v2158 = vmax.f32 %v2126, 0.0
        %v2159 = vmax.f32 %v2127, 0.0
        %v2160 = vmax.f32 %v2128, 0.0
        %v2161 = vmax.f32 %v2129, 0.0
        %v2162 = vmax.f32 %v2130, 0.0
        %v2163 = vmax.f32 %v2131, 0.0
        %v2164 = vmax.f32 %v2132, 0.0
        %v2165 = vmax.f32 %v2133, 0.0
        %v2166 = vmax.f32 %v2134, 0.0
        %2167 = vst [vmem:[%s289] sm:$0xff] %v2135
        %2168 = vst [vmem:[%s289 + $0x8] sm:$0xff] %v2136
        %2169 = vst [vmem:[%s289 + $0x10] sm:$0xff] %v2137
        %2170 = vst [vmem:[%s289 + $0x18] sm:$0xff] %v2138
        %2171 = vst [vmem:[%s289 + $0x20] sm:$0xff] %v2139
        %2172 = vst [vmem:[%s289 + $0x28] sm:$0xff] %v2140
        %2173 = vst [vmem:[%s289 + $0x30] sm:$0xff] %v2141
        %2174 = vst [vmem:[%s289 + $0x38] sm:$0xff] %v2142
        %2175 = vst [vmem:[%s289 + $0x40] sm:$0xff] %v2143
        %2176 = vst [vmem:[%s289 + $0x48] sm:$0xff] %v2144
        %2177 = vst [vmem:[%s289 + $0x50] sm:$0xff] %v2145
        %2178 = vst [vmem:[%s289 + $0x58] sm:$0xff] %v2146
        %2179 = vst [vmem:[%s289 + $0x60] sm:$0xff] %v2147
        %2180 = vst [vmem:[%s289 + $0x68] sm:$0xff] %v2148
        %2181 = vst [vmem:[%s289 + $0x70] sm:$0xff] %v2149
        %2182 = vst [vmem:[%s289 + $0x78] sm:$0xff] %v2150
        %2183 = vst [vmem:[%s289 + $0x80] sm:$0xff] %v2151
        %2184 = vst [vmem:[%s289 + $0x88] sm:$0xff] %v2152
        %2185 = vst [vmem:[%s289 + $0x90] sm:$0xff] %v2153
        %2186 = vst [vmem:[%s289 + $0x98] sm:$0xff] %v2154
        %2187 = vst [vmem:[%s289 + $0xa0] sm:$0xff] %v2155
        %2188 = vst [vmem:[%s289 + $0xa8] sm:$0xff] %v2156
        %2189 = vst [vmem:[%s289 + $0xb0] sm:$0xff] %v2157
        %2190 = vst [vmem:[%s289 + $0xb8] sm:$0xff] %v2158
        %2191 = vst [vmem:[%s289 + $0xc0] sm:$0xff] %v2159
        %2192 = vst [vmem:[%s289 + $0xc8] sm:$0xff] %v2160
        %2193 = vst [vmem:[%s289 + $0xd0] sm:$0xff] %v2161
        %2194 = vst [vmem:[%s289 + $0xd8] sm:$0xff] %v2162
        %2195 = vst [vmem:[%s289 + $0xe0] sm:$0xff] %v2163
        %2196 = vst [vmem:[%s289 + $0xe8] sm:$0xff] %v2164
        %2197 = vst [vmem:[%s289 + $0xf0] sm:$0xff] %v2165
        %2198 = vst [vmem:[%s289 + $0xf8] sm:$0xff] %v2166
        %s2199 = sand.u32 %s157, 1
        %s2200 = scalar_lea.sflag [#allocation5], %s2199
        %s2201 = sand.u32 %s157, 1
        %s2202 = smul.addr %s2201, 256
        %s2203 = scalar_lea.vmem [#allocation9], %s2202
        // Predicated region
        $region57: #{tpu_custom_call.1} parent=39 // pred_check
          %p2204 = pneg %p167
        $region58: #{tpu_custom_call.1} parent=39 // pred_check_branch
          %2206 = sbr.rel (%p2204) target = $region60
        $region59: #{tpu_custom_call.1} parent=39 // pred_region
          %s2207 = smul.u32 16, %s28
          %s2209 = ssub.s32 4096, 4096
          %2210 = vsyncadd %s2200, %s2209
          %s2211 = smul.addr %s2207, 2
          %s2212 = smul.addr %s27, 32
          %s2213 = sadd.s32 %s2211, %s2212
          %s2214 = smul.addr %s2213, 128
          %s2215 = scalar_lea.hbm %s5, %s2214
          %s2216 = sshll.u32 %s2203, 4
          %s2217 = int_to_ptr.vmem [resolvable:$true] %s2216
          %2222 = dma.vmem_to_hbm [thread:$0]  %s2217, 4096, %s2215, %s2200, 128, 128, 8
        $region60: #{tpu_custom_call.1} parent=39 // pred_fallthru
          _
      $region40: #{tpu_custom_call.1} parent=5 // pred_fallthru
        _
      %p2223 = scmp.le.s32.totalorder 2, %s18
      // Predicated region
      $region61: #{tpu_custom_call.1} parent=5 // pred_check
        %p2224 = pneg %p2223
      $region62: #{tpu_custom_call.1} parent=5 // pred_check_branch
        %2226 = sbr.rel (%p2224) target = $region64
      $region63: #{tpu_custom_call.1} parent=5 // pred_region
        %s2227 = ssub.s32 %s18, 2
        // Predicated region
        $region65: #{tpu_custom_call.1} parent=63 // pred_check
          %p2228 = pneg %p173
        $region66: #{tpu_custom_call.1} parent=63 // pred_check_branch
          %2230 = sbr.rel (%p2228) target = $region68
        $region67: #{tpu_custom_call.1} parent=63 // pred_region
          %s2231 = sand.u32 %s158, 1
          %s2232 = scalar_lea.sflag [#allocation5], %s2231
          %s2233 = sand.u32 %s158, 1
          %s2234 = smul.addr %s2233, 256
          %s2235 = scalar_lea.vmem [#allocation9], %s2234
          %2236 = dma.done %s2232, 4096
        $region68: #{tpu_custom_call.1} parent=63 // pred_fallthru
          _
      $region64: #{tpu_custom_call.1} parent=5 // pred_fallthru
        _
    $region6: #{tpu_custom_call.1} parent=1 // loop_footer
      %s22 = sadd.s32 1, %s18
    $region7: #{tpu_custom_call.1} parent=1 // loop_footer_branch
      %17 = sbr.rel target = $region3
    $region8: #{tpu_custom_call.1} parent=1 // loop_exit
      _
    %2237 = vsyncpa [#allocation4], 1
    %s2238 = scalar_lea.sflag [#allocation4], 1
    %2239 = vsyncpa %s2238, 1
    %2240 = vsyncpa [#allocation7], 1
    %2241 = vsyncpa [#allocation5], 1
    %s2242 = scalar_lea.sflag [#allocation5], 1
    %2243 = vsyncpa %s2242, 1

</llo_original>
